<compile_context>
chip_gen: v7x
topology: tpu7x:2x2x1
jax: 0.10.0
libtpu: 0.0.40
codegen_flags: <defaults>
</compile_context>

<pallas_src>
import jax
import jax.numpy as jnp
from jax.experimental import pallas as pl
from jax.experimental.pallas import tpu as pltpu


def discriminator_kernel(x_ref, w1_ref, b1_ref, w2_ref, b2_ref, w3t_ref, b3_ref, o_ref):
    # Cast the streamed f32 tile to bf16 in-kernel (VPU work hidden under the x DMA).
    x = x_ref[...].astype(jnp.bfloat16)                              # (tm, fan_in)

    # fc1 + ReLU   (bf16 MXU matmul, f32 accumulate / bias / activation)
    h1 = jnp.dot(x, w1_ref[...], preferred_element_type=jnp.float32) + b1_ref[...]
    h1 = jnp.maximum(h1, 0.0)

    # fc2 + ReLU
    h2 = jnp.dot(h1.astype(jnp.bfloat16), w2_ref[...],
                 preferred_element_type=jnp.float32) + b2_ref[...]
    h2 = jnp.maximum(h2, 0.0)

    # fc3 (single output unit): contract over features with the transposed weight slab
    # so the per-row result lands in the lane dimension -> (8, tm), row 0 meaningful.
    logits = jax.lax.dot_general(
        w3t_ref[...], h2.astype(jnp.bfloat16),
        dimension_numbers=(((1,), (1,)), ((), ())),
        preferred_element_type=jnp.float32)                          # (8, tm)
    row = logits[0:1, :] + b3_ref[...]                               # (1, tm)
    o_ref[0] = jax.nn.sigmoid(row).astype(o_ref.dtype)               # lane-dense store


def _round_up(a, m):
    return (a + m - 1) // m * m


def _choose_tile_m(batch, max_tile=1024):
    """128-aligned batch tile (it is also the lane dim of the transposed output store).

    Prefers two balanced tiles over one larger tile when that reduces per-step work
    (keeps both v7x TensorCores busy); large batches get ~max_tile, balanced tiles.
    """
    if batch <= 128:
        return 128
    single = _round_up(batch, 128)
    if single <= max_tile:
        halved = _round_up(pl.cdiv(batch, 2), 128)
        return halved if halved < single else single
    return min(max_tile, _round_up(pl.cdiv(batch, pl.cdiv(batch, max_tile)), 128))


def _vmem_limit_bytes():
    """~75% of physical VMEM: ~48 MiB on v7x, ~96 MiB on v5e/v6e."""
    try:
        return int(pltpu.get_tpu_info().vmem_capacity_bytes * 3 // 4)
    except Exception:
        return 32 * 1024 * 1024


def prepare_params(params):
    """One-time weight preparation (hoisted out of the per-call forward path)."""
    fan_in = params["w1"].shape[0]
    w3t = jnp.zeros((8, fan_in), jnp.bfloat16).at[0, :].set(
        params["w3"].reshape(fan_in).astype(jnp.bfloat16))
    return dict(
        w1=params["w1"].astype(jnp.bfloat16),
        b1=params["b1"].reshape(1, -1).astype(jnp.float32),
        w2=params["w2"].astype(jnp.bfloat16),
        b2=params["b2"].reshape(1, -1).astype(jnp.float32),
        w3t=w3t,
        b3=params["b3"].reshape(1, 1).astype(jnp.float32),
    )


def discriminator_forward(x, prepared, *, max_tile_m=1024):
    """x: (B, fan_in) float32. prepared: output of prepare_params()."""
    B, fan_in = x.shape
    w1, b1 = prepared["w1"], prepared["b1"]
    w2, b2 = prepared["w2"], prepared["b2"]
    w3t, b3 = prepared["w3t"], prepared["b3"]

    tm = _choose_tile_m(B, max_tile_m)
    n_steps = pl.cdiv(B, tm)

    def run(single_buffer_weights):
        def resident(shape):
            # Block index never changes -> keep VMEM-resident; single-buffer to halve
            # the resident footprint (double-buffering a constant block is pure waste).
            if single_buffer_weights:
                return pl.BlockSpec(shape, lambda i: (0, 0),
                                    pipeline_mode=pl.Buffered(1))
            return pl.BlockSpec(shape, lambda i: (0, 0))

        return pl.pallas_call(
            discriminator_kernel,
            out_shape=jax.ShapeDtypeStruct((n_steps, 1, tm), jnp.float32),
            grid=(n_steps,),
            in_specs=[
                pl.BlockSpec((tm, fan_in), lambda i: (i, 0)),   # streamed f32 x tile
                resident(w1.shape), resident(b1.shape),
                resident(w2.shape), resident(b2.shape),
                resident(w3t.shape), resident(b3.shape),
            ],
            out_specs=pl.BlockSpec((1, 1, tm), lambda i: (i, 0, 0)),
            compiler_params=pltpu.CompilerParams(
                dimension_semantics=("parallel",),              # megacore on v7x
                vmem_limit_bytes=_vmem_limit_bytes(),
            ),
        )(x, w1, b1, w2, b2, w3t, b3)

    try:
        out = jax.block_until_ready(run(single_buffer_weights=True))
    except Exception:
        # pl.Buffered(1) not accepted by this jax/libtpu combo -> default buffering.
        out = run(single_buffer_weights=False)

    # (n_steps, 1, tm) -> (B, 1); garbage rows from the ragged last tile are dropped.
    return out.reshape(-1)[:B].reshape(B, 1).astype(x.dtype)


def init_params(key, fan_in):
    """Deterministic init mimicking nn.Linear's U(-1/sqrt(in), 1/sqrt(in))."""
    def linear(key, n_in, n_out):
        kw, kb = jax.random.split(key)
        bound = 1.0 / jnp.sqrt(jnp.float32(n_in))
        w = jax.random.uniform(kw, (n_in, n_out), jnp.float32, -bound, bound)
        b = jax.random.uniform(kb, (1, n_out), jnp.float32, -bound, bound)
        return w, b

    k1, k2, k3 = jax.random.split(key, 3)
    w1, b1 = linear(k1, fan_in, fan_in * 2)
    w2, b2 = linear(k2, fan_in * 2, fan_in)
    w3, b3 = linear(k3, fan_in, 1)
    return {"w1": w1, "b1": b1, "w2": w2, "b2": b2, "w3": w3, "b3": b3}


def reference_forward(x, p):
    h1 = jnp.maximum(x @ p["w1"] + p["b1"], 0.0)
    h2 = jnp.maximum(h1 @ p["w2"] + p["b2"], 0.0)
    return jax.nn.sigmoid(h2 @ p["w3"] + p["b3"])


if __name__ == "__main__":
    key = jax.random.PRNGKey(0)
    kx, kp = jax.random.split(key)

    batch, fan_in = 300, 32  # non-multiple batch exercises the ragged last tile + 2-step grid
    x = jax.random.normal(kx, (batch, fan_in), jnp.float32)
    params = init_params(kp, fan_in)
    prepared = prepare_params(params)   # one-time weight prep (bf16 casts, fc3 transpose)

    out = jax.block_until_ready(discriminator_forward(x, prepared))

    ref = reference_forward(x, params)
    assert out.shape == (batch, 1)
    # bf16 matmul inputs (f32 accumulate) -> small deviation from the f32 reference.
    assert jnp.allclose(out, ref, atol=2e-2, rtol=2e-2)

    print("KERNEL_OK")
</pallas_src>

<mosaic_0001>
module attributes {stable_mosaic.version = 11 : i64} {
  func.func @discriminator_kernel(%arg0: i32, %arg1: memref<256x32xf32, #tpu.memory_space<vmem>>, %arg2: memref<32x64xbf16, #tpu.memory_space<vmem>>, %arg3: memref<1x64xf32, #tpu.memory_space<vmem>>, %arg4: memref<64x32xbf16, #tpu.memory_space<vmem>>, %arg5: memref<1x32xf32, #tpu.memory_space<vmem>>, %arg6: memref<8x32xbf16, #tpu.memory_space<vmem>>, %arg7: memref<1x1xf32, #tpu.memory_space<vmem>>, %arg8: memref<1x1x256xf32, #tpu.memory_space<vmem>>) attributes {dimension_semantics = [#tpu.dimension_semantics<parallel>], iteration_bounds = array<i64: 2>, scalar_prefetch = 0 : i64, scratch_operands = 0 : i64, tpu.core_type = #tpu.core_type<tc>, window_params = [{transform_indices = @transform_0, window_bounds = array<i64: 256, 32>}, {pipeline_mode = #tpu.pipeline_mode<synchronous>, transform_indices = @transform_1, window_bounds = array<i64: 32, 64>}, {pipeline_mode = #tpu.pipeline_mode<synchronous>, transform_indices = @transform_2, window_bounds = array<i64: 1, 64>}, {pipeline_mode = #tpu.pipeline_mode<synchronous>, transform_indices = @transform_3, window_bounds = array<i64: 64, 32>}, {pipeline_mode = #tpu.pipeline_mode<synchronous>, transform_indices = @transform_4, window_bounds = array<i64: 1, 32>}, {pipeline_mode = #tpu.pipeline_mode<synchronous>, transform_indices = @transform_5, window_bounds = array<i64: 8, 32>}, {pipeline_mode = #tpu.pipeline_mode<synchronous>, transform_indices = @transform_6, window_bounds = array<i64: 1, 1>}, {transform_indices = @transform_7, window_bounds = array<i64: 1, 1, 256>}]} {
    %c0 = arith.constant 0 : index
    %c0_0 = arith.constant 0 : index
    %0 = vector.load %arg1[%c0, %c0_0] : memref<256x32xf32, #tpu.memory_space<vmem>>, vector<256x32xf32>
    %1 = arith.truncf %0 : vector<256x32xf32> to vector<256x32xbf16>
    %c0_1 = arith.constant 0 : index
    %c0_2 = arith.constant 0 : index
    %2 = vector.load %arg2[%c0_1, %c0_2] : memref<32x64xbf16, #tpu.memory_space<vmem>>, vector<32x64xbf16>
    %cst = arith.constant dense<0.000000e+00> : vector<256x64xf32>
    %3 = tpu.matmul %1, %2, %cst {dimension_numbers = #tpu.dot_dimension_numbers<[1], [0], [0], [1], [0, 0, 1, 1], [], []>} : vector<256x32xbf16>, vector<32x64xbf16>, vector<256x64xf32> -> vector<256x64xf32>
    %c0_3 = arith.constant 0 : index
    %c0_4 = arith.constant 0 : index
    %4 = vector.load %arg3[%c0_3, %c0_4] : memref<1x64xf32, #tpu.memory_space<vmem>>, vector<1x64xf32>
    %5 = vector.broadcast %4 : vector<1x64xf32> to vector<256x64xf32>
    %6 = arith.addf %3, %5 : vector<256x64xf32>
    %cst_5 = arith.constant 0.000000e+00 : f32
    %7 = vector.broadcast %cst_5 : f32 to vector<256x64xf32>
    %8 = arith.maximumf %6, %7 : vector<256x64xf32>
    %9 = arith.truncf %8 : vector<256x64xf32> to vector<256x64xbf16>
    %c0_6 = arith.constant 0 : index
    %c0_7 = arith.constant 0 : index
    %10 = vector.load %arg4[%c0_6, %c0_7] : memref<64x32xbf16, #tpu.memory_space<vmem>>, vector<64x32xbf16>
    %cst_8 = arith.constant dense<0.000000e+00> : vector<256x32xf32>
    %11 = tpu.matmul %9, %10, %cst_8 {dimension_numbers = #tpu.dot_dimension_numbers<[1], [0], [0], [1], [0, 0, 1, 1], [], []>} : vector<256x64xbf16>, vector<64x32xbf16>, vector<256x32xf32> -> vector<256x32xf32>
    %c0_9 = arith.constant 0 : index
    %c0_10 = arith.constant 0 : index
    %12 = vector.load %arg5[%c0_9, %c0_10] : memref<1x32xf32, #tpu.memory_space<vmem>>, vector<1x32xf32>
    %13 = vector.broadcast %12 : vector<1x32xf32> to vector<256x32xf32>
    %14 = arith.addf %11, %13 : vector<256x32xf32>
    %cst_11 = arith.constant 0.000000e+00 : f32
    %15 = vector.broadcast %cst_11 : f32 to vector<256x32xf32>
    %16 = arith.maximumf %14, %15 : vector<256x32xf32>
    %c0_12 = arith.constant 0 : index
    %c0_13 = arith.constant 0 : index
    %17 = vector.load %arg6[%c0_12, %c0_13] : memref<8x32xbf16, #tpu.memory_space<vmem>>, vector<8x32xbf16>
    %18 = arith.truncf %16 : vector<256x32xf32> to vector<256x32xbf16>
    %cst_14 = arith.constant dense<0.000000e+00> : vector<8x256xf32>
    %19 = tpu.matmul %17, %18, %cst_14 {dimension_numbers = #tpu.dot_dimension_numbers<[1], [1], [0], [0], [0, 0, 1, 0], [], []>} : vector<8x32xbf16>, vector<256x32xbf16>, vector<8x256xf32> -> vector<8x256xf32>
    %20 = vector.extract_strided_slice %19 {offsets = [0, 0], sizes = [1, 256], strides = [1, 1]} : vector<8x256xf32> to vector<1x256xf32>
    %c0_15 = arith.constant 0 : index
    %c0_16 = arith.constant 0 : index
    %21 = vector.load %arg7[%c0_15, %c0_16] : memref<1x1xf32, #tpu.memory_space<vmem>>, vector<1x1xf32>
    %22 = vector.broadcast %21 : vector<1x1xf32> to vector<1x256xf32>
    %23 = arith.addf %20, %22 : vector<1x256xf32>
    %24 = arith.negf %23 : vector<1x256xf32>
    %25 = math.exp %24 : vector<1x256xf32>
    %cst_17 = arith.constant 1.000000e+00 : f32
    %26 = vector.broadcast %cst_17 : f32 to vector<1x256xf32>
    %27 = arith.addf %26, %25 : vector<1x256xf32>
    %28 = arith.divf %26, %27 : vector<1x256xf32>
    %c0_18 = arith.constant 0 : index
    %c0_19 = arith.constant 0 : index
    %c0_20 = arith.constant 0 : index
    %29 = vector.load %arg8[%c0_18, %c0_19, %c0_20] : memref<1x1x256xf32, #tpu.memory_space<vmem>>, vector<1x1x256xf32>
    %30 = vector.shape_cast %29 : vector<1x1x256xf32> to vector<1x256xf32>
    %31 = vector.shape_cast %28 : vector<1x256xf32> to vector<1x1x256xf32>
    tpu.vector_store %arg8[%c0_18, %c0_19, %c0_20], %31 {strides = array<i32>} : memref<1x1x256xf32, #tpu.memory_space<vmem>>, vector<1x1x256xf32>,
    return
  }
  func.func @transform_0(%arg0: i32) -> (i32, i32) {
    %c0_i32 = arith.constant 0 : i32
    %c0_i32_0 = arith.constant 0 : i32
    return %arg0, %c0_i32 : i32, i32
  }
  func.func @transform_1(%arg0: i32) -> (i32, i32) {
    %c0_i32 = arith.constant 0 : i32
    %c0_i32_0 = arith.constant 0 : i32
    %c0_i32_1 = arith.constant 0 : i32
    return %c0_i32, %c0_i32_0 : i32, i32
  }
  func.func @transform_2(%arg0: i32) -> (i32, i32) {
    %c0_i32 = arith.constant 0 : i32
    %c0_i32_0 = arith.constant 0 : i32
    %c0_i32_1 = arith.constant 0 : i32
    return %c0_i32, %c0_i32_0 : i32, i32
  }
  func.func @transform_3(%arg0: i32) -> (i32, i32) {
    %c0_i32 = arith.constant 0 : i32
    %c0_i32_0 = arith.constant 0 : i32
    %c0_i32_1 = arith.constant 0 : i32
    return %c0_i32, %c0_i32_0 : i32, i32
  }
  func.func @transform_4(%arg0: i32) -> (i32, i32) {
    %c0_i32 = arith.constant 0 : i32
    %c0_i32_0 = arith.constant 0 : i32
    %c0_i32_1 = arith.constant 0 : i32
    return %c0_i32, %c0_i32_0 : i32, i32
  }
  func.func @transform_5(%arg0: i32) -> (i32, i32) {
    %c0_i32 = arith.constant 0 : i32
    %c0_i32_0 = arith.constant 0 : i32
    %c0_i32_1 = arith.constant 0 : i32
    return %c0_i32, %c0_i32_0 : i32, i32
  }
  func.func @transform_6(%arg0: i32) -> (i32, i32) {
    %c0_i32 = arith.constant 0 : i32
    %c0_i32_0 = arith.constant 0 : i32
    %c0_i32_1 = arith.constant 0 : i32
    return %c0_i32, %c0_i32_0 : i32, i32
  }
  func.func @transform_7(%arg0: i32) -> (i32, i32, i32) {
    %c0_i32 = arith.constant 0 : i32
    %c0_i32_0 = arith.constant 0 : i32
    %c0_i32_1 = arith.constant 0 : i32
    return %arg0, %c0_i32, %c0_i32_0 : i32, i32, i32
  }
}

module attributes {stable_mosaic.version = 11 : i64} {
  func.func @discriminator_kernel(%arg0: i32, %arg1: memref<256x32xf32, #tpu.memory_space<vmem>>, %arg2: memref<32x64xbf16, #tpu.memory_space<vmem>>, %arg3: memref<1x64xf32, #tpu.memory_space<vmem>>, %arg4: memref<64x32xbf16, #tpu.memory_space<vmem>>, %arg5: memref<1x32xf32, #tpu.memory_space<vmem>>, %arg6: memref<8x32xbf16, #tpu.memory_space<vmem>>, %arg7: memref<1x1xf32, #tpu.memory_space<vmem>>, %arg8: memref<1x1x256xf32, #tpu.memory_space<vmem>>) attributes {dimension_semantics = [#tpu.dimension_semantics<parallel>], iteration_bounds = array<i64: 2>, scalar_prefetch = 0 : i64, scratch_operands = 0 : i64, tpu.core_type = #tpu.core_type<tc>, window_params = [{transform_indices = @transform_0, window_bounds = array<i64: 256, 32>}, {pipeline_mode = #tpu.pipeline_mode<synchronous>, transform_indices = @transform_1, window_bounds = array<i64: 32, 64>}, {pipeline_mode = #tpu.pipeline_mode<synchronous>, transform_indices = @transform_2, window_bounds = array<i64: 1, 64>}, {pipeline_mode = #tpu.pipeline_mode<synchronous>, transform_indices = @transform_3, window_bounds = array<i64: 64, 32>}, {pipeline_mode = #tpu.pipeline_mode<synchronous>, transform_indices = @transform_4, window_bounds = array<i64: 1, 32>}, {pipeline_mode = #tpu.pipeline_mode<synchronous>, transform_indices = @transform_5, window_bounds = array<i64: 8, 32>}, {pipeline_mode = #tpu.pipeline_mode<synchronous>, transform_indices = @transform_6, window_bounds = array<i64: 1, 1>}, {transform_indices = @transform_7, window_bounds = array<i64: 1, 1, 256>}]} {
    %c0 = arith.constant 0 : index
    %c0_0 = arith.constant 0 : index
    %0 = vector.load %arg1[%c0, %c0_0] : memref<256x32xf32, #tpu.memory_space<vmem>>, vector<256x32xf32>
    %1 = arith.truncf %0 : vector<256x32xf32> to vector<256x32xbf16>
    %c0_1 = arith.constant 0 : index
    %c0_2 = arith.constant 0 : index
    %2 = vector.load %arg2[%c0_1, %c0_2] : memref<32x64xbf16, #tpu.memory_space<vmem>>, vector<32x64xbf16>
    %cst = arith.constant dense<0.000000e+00> : vector<256x64xf32>
    %3 = tpu.matmul %1, %2, %cst {dimension_numbers = #tpu.dot_dimension_numbers<[1], [0], [0], [1], [0, 0, 1, 1], [], []>} : vector<256x32xbf16>, vector<32x64xbf16>, vector<256x64xf32> -> vector<256x64xf32>
    %c0_3 = arith.constant 0 : index
    %c0_4 = arith.constant 0 : index
    %4 = vector.load %arg3[%c0_3, %c0_4] : memref<1x64xf32, #tpu.memory_space<vmem>>, vector<1x64xf32>
    %5 = vector.broadcast %4 : vector<1x64xf32> to vector<256x64xf32>
    %6 = arith.addf %3, %5 : vector<256x64xf32>
    %cst_5 = arith.constant 0.000000e+00 : f32
    %7 = vector.broadcast %cst_5 : f32 to vector<256x64xf32>
    %8 = arith.maximumf %6, %7 : vector<256x64xf32>
    %9 = arith.truncf %8 : vector<256x64xf32> to vector<256x64xbf16>
    %c0_6 = arith.constant 0 : index
    %c0_7 = arith.constant 0 : index
    %10 = vector.load %arg4[%c0_6, %c0_7] : memref<64x32xbf16, #tpu.memory_space<vmem>>, vector<64x32xbf16>
    %cst_8 = arith.constant dense<0.000000e+00> : vector<256x32xf32>
    %11 = tpu.matmul %9, %10, %cst_8 {dimension_numbers = #tpu.dot_dimension_numbers<[1], [0], [0], [1], [0, 0, 1, 1], [], []>} : vector<256x64xbf16>, vector<64x32xbf16>, vector<256x32xf32> -> vector<256x32xf32>
    %c0_9 = arith.constant 0 : index
    %c0_10 = arith.constant 0 : index
    %12 = vector.load %arg5[%c0_9, %c0_10] : memref<1x32xf32, #tpu.memory_space<vmem>>, vector<1x32xf32>
    %13 = vector.broadcast %12 : vector<1x32xf32> to vector<256x32xf32>
    %14 = arith.addf %11, %13 : vector<256x32xf32>
    %cst_11 = arith.constant 0.000000e+00 : f32
    %15 = vector.broadcast %cst_11 : f32 to vector<256x32xf32>
    %16 = arith.maximumf %14, %15 : vector<256x32xf32>
    %c0_12 = arith.constant 0 : index
    %c0_13 = arith.constant 0 : index
    %17 = vector.load %arg6[%c0_12, %c0_13] : memref<8x32xbf16, #tpu.memory_space<vmem>>, vector<8x32xbf16>
    %18 = arith.truncf %16 : vector<256x32xf32> to vector<256x32xbf16>
    %cst_14 = arith.constant dense<0.000000e+00> : vector<8x256xf32>
    %19 = tpu.matmul %17, %18, %cst_14 {dimension_numbers = #tpu.dot_dimension_numbers<[1], [1], [0], [0], [0, 0, 1, 0], [], []>} : vector<8x32xbf16>, vector<256x32xbf16>, vector<8x256xf32> -> vector<8x256xf32>
    %20 = vector.extract_strided_slice %19 {offsets = [0, 0], sizes = [1, 256], strides = [1, 1]} : vector<8x256xf32> to vector<1x256xf32>
    %c0_15 = arith.constant 0 : index
    %c0_16 = arith.constant 0 : index
    %21 = vector.load %arg7[%c0_15, %c0_16] : memref<1x1xf32, #tpu.memory_space<vmem>>, vector<1x1xf32>
    %22 = vector.broadcast %21 : vector<1x1xf32> to vector<1x256xf32>
    %23 = arith.addf %20, %22 : vector<1x256xf32>
    %24 = arith.negf %23 : vector<1x256xf32>
    %25 = math.exp %24 : vector<1x256xf32>
    %cst_17 = arith.constant 1.000000e+00 : f32
    %26 = vector.broadcast %cst_17 : f32 to vector<1x256xf32>
    %27 = arith.addf %26, %25 : vector<1x256xf32>
    %28 = arith.divf %26, %27 : vector<1x256xf32>
    %c0_18 = arith.constant 0 : index
    %c0_19 = arith.constant 0 : index
    %c0_20 = arith.constant 0 : index
    %29 = vector.load %arg8[%c0_18, %c0_19, %c0_20] : memref<1x1x256xf32, #tpu.memory_space<vmem>>, vector<1x1x256xf32>
    %30 = vector.shape_cast %29 : vector<1x1x256xf32> to vector<1x256xf32>
    %31 = vector.shape_cast %28 : vector<1x256xf32> to vector<1x1x256xf32>
    tpu.vector_store %arg8[%c0_18, %c0_19, %c0_20], %31 {strides = array<i32>} : memref<1x1x256xf32, #tpu.memory_space<vmem>>, vector<1x1x256xf32>,
    return
  }
  func.func @transform_0(%arg0: i32) -> (i32, i32) {
    %c0_i32 = arith.constant 0 : i32
    %c0_i32_0 = arith.constant 0 : i32
    return %arg0, %c0_i32 : i32, i32
  }
  func.func @transform_1(%arg0: i32) -> (i32, i32) {
    %c0_i32 = arith.constant 0 : i32
    %c0_i32_0 = arith.constant 0 : i32
    %c0_i32_1 = arith.constant 0 : i32
    return %c0_i32, %c0_i32_0 : i32, i32
  }
  func.func @transform_2(%arg0: i32) -> (i32, i32) {
    %c0_i32 = arith.constant 0 : i32
    %c0_i32_0 = arith.constant 0 : i32
    %c0_i32_1 = arith.constant 0 : i32
    return %c0_i32, %c0_i32_0 : i32, i32
  }
  func.func @transform_3(%arg0: i32) -> (i32, i32) {
    %c0_i32 = arith.constant 0 : i32
    %c0_i32_0 = arith.constant 0 : i32
    %c0_i32_1 = arith.constant 0 : i32
    return %c0_i32, %c0_i32_0 : i32, i32
  }
  func.func @transform_4(%arg0: i32) -> (i32, i32) {
    %c0_i32 = arith.constant 0 : i32
    %c0_i32_0 = arith.constant 0 : i32
    %c0_i32_1 = arith.constant 0 : i32
    return %c0_i32, %c0_i32_0 : i32, i32
  }
  func.func @transform_5(%arg0: i32) -> (i32, i32) {
    %c0_i32 = arith.constant 0 : i32
    %c0_i32_0 = arith.constant 0 : i32
    %c0_i32_1 = arith.constant 0 : i32
    return %c0_i32, %c0_i32_0 : i32, i32
  }
  func.func @transform_6(%arg0: i32) -> (i32, i32) {
    %c0_i32 = arith.constant 0 : i32
    %c0_i32_0 = arith.constant 0 : i32
    %c0_i32_1 = arith.constant 0 : i32
    return %c0_i32, %c0_i32_0 : i32, i32
  }
  func.func @transform_7(%arg0: i32) -> (i32, i32, i32) {
    %c0_i32 = arith.constant 0 : i32
    %c0_i32_0 = arith.constant 0 : i32
    %c0_i32_1 = arith.constant 0 : i32
    return %arg0, %c0_i32, %c0_i32_0 : i32, i32, i32
  }
}

</mosaic_0001>

<llo_original>
// kernel: tpu_custom_call.1
$region0: #{tpu_custom_call.1}
  #allocation0 [shape = 'u32[]', space=smem, size = 0x4, offset = 0x4, fixed_abs, tag = 'smem constant byte address 0x4 - core index']
  #allocation1 [shape = 'u32[144,128]{1,0:T(1,128)}', space=vmem, size = 0x12000, scoped, tag = 'internal scratch']
  #allocation2 [shape = 'f32[1,1]{1,0:T(1,128)S(1)}', space=vmem, size = 0x200, scoped, tag = 'scoped memory for tpu_custom_call.1']
  %s0 = inlined_call_operand.vmem [shape: f32[300,32], index: 0, kind: input, shape index: {}]
  %s1 = inlined_call_operand.vmem [shape: bf16[32,64], index: 1, kind: input, shape index: {}]
  %s2 = inlined_call_operand.vmem [shape: f32[1,64], index: 2, kind: input, shape index: {}]
  %s3 = inlined_call_operand.vmem [shape: bf16[64,32], index: 3, kind: input, shape index: {}]
  %s4 = inlined_call_operand.vmem [shape: f32[1,32], index: 4, kind: input, shape index: {}]
  %s5 = inlined_call_operand.vmem [shape: bf16[8,32], index: 5, kind: input, shape index: {}]
  %s6 = inlined_call_operand.<no memory space> [shape: f32[1,1], index: 6, kind: input, shape index: {}]
  %s7 = inlined_call_operand.hbm [shape: f32[2,1,256], index: 7, kind: output, shape index: {}]
  %s8 = sld [smem:[#allocation0]]
  $region61: #{tpu_custom_call.1} parent=0
    _
  %s10 = ssub.s32 1, %s8
  %s11 = scalar_select 0, %s10, %s8
  %v12 = vstv %s6
  %13 = vst [vmem:[#allocation2] sm:$0x1] %v12
  $region1: #{tpu_custom_call.1} parent=0
    #allocation3 [shape = 'u8[2048]{0}', space=vmem, size = 0x800, scoped, tag = 'output window, operand 0']
    #allocation4 [shape = 's32[2]{0}', space=sflag, size = 0x8, scoped, tag = 'scoped memory for tpu_custom_call.1']
    %14 = vsyncpa [#allocation4], 0
    %s15 = scalar_lea.sflag [#allocation4], 1
    %16 = vsyncpa %s15, 0
    loop: start=0, step=1, limit=4
    $region2: #{tpu_custom_call.1} parent=1 // loop_pre_header
      _
    $region3: #{tpu_custom_call.1} parent=1 // loop_header
      %s18 = sphi 0, %s22
      %p19 = scmp.ge.s32.totalorder %s18, 4
      %s28 = sphi 0, %s30
      %s31 = sphi 0, %s28
      %s32 = sphi 0, %s31
      %s48 = sphi 0, %s32
      %s52 = sphi 0, %s52
      %s54 = sphi 0, %s52
      %s55 = sphi 0, %s54
      %s69 = sphi 0, %s55
      %s73 = sphi 0, %s73
      %s75 = sphi 0, %s73
      %s76 = sphi 0, %s75
      %s90 = sphi 0, %s76
      %s94 = sphi 0, %s94
      %s96 = sphi 0, %s94
      %s97 = sphi 0, %s96
      %s111 = sphi 0, %s97
      %s115 = sphi 0, %s115
      %s117 = sphi 0, %s115
      %s118 = sphi 0, %s117
      %s132 = sphi 0, %s118
      %s136 = sphi 0, %s136
      %s138 = sphi 0, %s136
      %s139 = sphi 0, %s138
      %s153 = sphi 0, %s139
      %s157 = sphi 0, %s157
      %s159 = sphi 0, %s157
      %s160 = sphi 0, %s159
      %s174 = sphi 0, %s160
      %s180 = sphi 0, %s182
      %s183 = sphi 0, %s180
      %s184 = sphi 0, %s183
      %s200 = sphi 0, %s184
    $region4: #{tpu_custom_call.1} parent=1 // loop_header_branch
      %21 = sbr.rel (%p19) target = $region8
    $region5: #{tpu_custom_call.1} parent=1 // loop_body
      %s23 = ssub.s32 %s18, 1
      %s24 = ssub.s32 %s18, 2
      %s25 = sadd.s32 %s18, 1
      %s26 = ssub.s32 %s18, %s25
      %p27 = scmp.eq.s32.totalorder %s26, 0
      %s29 = sadd.s32 %s28, 1
      %s30 = scalar_select %p27, %s28, %s29
      %p33 = pneg %p27
      %p34 = scmp.eq.s32.totalorder %s18, 1
      %p35 = por %p33, %p34
      %p36 = scmp.ne.s32.totalorder %s28, %s31
      %p37 = scmp.eq.s32.totalorder %s18, 0
      %p38 = por %p36, %p37
      %p39 = scmp.ne.s32.totalorder %s28, %s31
      %p40 = scmp.eq.s32.totalorder %s23, 1
      %p41 = por %p39, %p40
      %p42 = scmp.ne.s32.totalorder %s31, %s32
      %p43 = scmp.eq.s32.totalorder %s23, 0
      %p44 = por %p42, %p43
      %p45 = scmp.ne.s32.totalorder %s31, %s32
      %p46 = scmp.eq.s32.totalorder %s24, 1
      %p47 = por %p45, %p46
      %p49 = scmp.ne.s32.totalorder %s32, %s48
      %p50 = scmp.eq.s32.totalorder %s24, 0
      %p51 = por %p49, %p50
      %s53 = sadd.s32 %s52, 1
      %p56 = scmp.eq.s32.totalorder %s18, 1
      %p57 = scmp.ne.s32.totalorder %s52, %s54
      %p58 = scmp.eq.s32.totalorder %s18, 0
      %p59 = por %p57, %p58
      %p60 = scmp.ne.s32.totalorder %s52, %s54
      %p61 = scmp.eq.s32.totalorder %s23, 1
      %p62 = por %p60, %p61
      %p63 = scmp.ne.s32.totalorder %s54, %s55
      %p64 = scmp.eq.s32.totalorder %s23, 0
      %p65 = por %p63, %p64
      %p66 = scmp.ne.s32.totalorder %s54, %s55
      %p67 = scmp.eq.s32.totalorder %s24, 1
      %p68 = por %p66, %p67
      %p70 = scmp.ne.s32.totalorder %s55, %s69
      %p71 = scmp.eq.s32.totalorder %s24, 0
      %p72 = por %p70, %p71
      %s74 = sadd.s32 %s73, 1
      %p77 = scmp.eq.s32.totalorder %s18, 1
      %p78 = scmp.ne.s32.totalorder %s73, %s75
      %p79 = scmp.eq.s32.totalorder %s18, 0
      %p80 = por %p78, %p79
      %p81 = scmp.ne.s32.totalorder %s73, %s75
      %p82 = scmp.eq.s32.totalorder %s23, 1
      %p83 = por %p81, %p82
      %p84 = scmp.ne.s32.totalorder %s75, %s76
      %p85 = scmp.eq.s32.totalorder %s23, 0
      %p86 = por %p84, %p85
      %p87 = scmp.ne.s32.totalorder %s75, %s76
      %p88 = scmp.eq.s32.totalorder %s24, 1
      %p89 = por %p87, %p88
      %p91 = scmp.ne.s32.totalorder %s76, %s90
      %p92 = scmp.eq.s32.totalorder %s24, 0
      %p93 = por %p91, %p92
      %s95 = sadd.s32 %s94, 1
      %p98 = scmp.eq.s32.totalorder %s18, 1
      %p99 = scmp.ne.s32.totalorder %s94, %s96
      %p100 = scmp.eq.s32.totalorder %s18, 0
      %p101 = por %p99, %p100
      %p102 = scmp.ne.s32.totalorder %s94, %s96
      %p103 = scmp.eq.s32.totalorder %s23, 1
      %p104 = por %p102, %p103
      %p105 = scmp.ne.s32.totalorder %s96, %s97
      %p106 = scmp.eq.s32.totalorder %s23, 0
      %p107 = por %p105, %p106
      %p108 = scmp.ne.s32.totalorder %s96, %s97
      %p109 = scmp.eq.s32.totalorder %s24, 1
      %p110 = por %p108, %p109
      %p112 = scmp.ne.s32.totalorder %s97, %s111
      %p113 = scmp.eq.s32.totalorder %s24, 0
      %p114 = por %p112, %p113
      %s116 = sadd.s32 %s115, 1
      %p119 = scmp.eq.s32.totalorder %s18, 1
      %p120 = scmp.ne.s32.totalorder %s115, %s117
      %p121 = scmp.eq.s32.totalorder %s18, 0
      %p122 = por %p120, %p121
      %p123 = scmp.ne.s32.totalorder %s115, %s117
      %p124 = scmp.eq.s32.totalorder %s23, 1
      %p125 = por %p123, %p124
      %p126 = scmp.ne.s32.totalorder %s117, %s118
      %p127 = scmp.eq.s32.totalorder %s23, 0
      %p128 = por %p126, %p127
      %p129 = scmp.ne.s32.totalorder %s117, %s118
      %p130 = scmp.eq.s32.totalorder %s24, 1
      %p131 = por %p129, %p130
      %p133 = scmp.ne.s32.totalorder %s118, %s132
      %p134 = scmp.eq.s32.totalorder %s24, 0
      %p135 = por %p133, %p134
      %s137 = sadd.s32 %s136, 1
      %p140 = scmp.eq.s32.totalorder %s18, 1
      %p141 = scmp.ne.s32.totalorder %s136, %s138
      %p142 = scmp.eq.s32.totalorder %s18, 0
      %p143 = por %p141, %p142
      %p144 = scmp.ne.s32.totalorder %s136, %s138
      %p145 = scmp.eq.s32.totalorder %s23, 1
      %p146 = por %p144, %p145
      %p147 = scmp.ne.s32.totalorder %s138, %s139
      %p148 = scmp.eq.s32.totalorder %s23, 0
      %p149 = por %p147, %p148
      %p150 = scmp.ne.s32.totalorder %s138, %s139
      %p151 = scmp.eq.s32.totalorder %s24, 1
      %p152 = por %p150, %p151
      %p154 = scmp.ne.s32.totalorder %s139, %s153
      %p155 = scmp.eq.s32.totalorder %s24, 0
      %p156 = por %p154, %p155
      %s158 = sadd.s32 %s157, 1
      %p161 = scmp.eq.s32.totalorder %s18, 1
      %p162 = scmp.ne.s32.totalorder %s157, %s159
      %p163 = scmp.eq.s32.totalorder %s18, 0
      %p164 = por %p162, %p163
      %p165 = scmp.ne.s32.totalorder %s157, %s159
      %p166 = scmp.eq.s32.totalorder %s23, 1
      %p167 = por %p165, %p166
      %p168 = scmp.ne.s32.totalorder %s159, %s160
      %p169 = scmp.eq.s32.totalorder %s23, 0
      %p170 = por %p168, %p169
      %p171 = scmp.ne.s32.totalorder %s159, %s160
      %p172 = scmp.eq.s32.totalorder %s24, 1
      %p173 = por %p171, %p172
      %p175 = scmp.ne.s32.totalorder %s160, %s174
      %p176 = scmp.eq.s32.totalorder %s24, 0
      %p177 = por %p175, %p176
      %s178 = ssub.s32 %s18, %s25
      %p179 = scmp.eq.s32.totalorder %s178, 0
      %s181 = sadd.s32 %s180, 1
      %s182 = scalar_select %p179, %s180, %s181
      %p185 = pneg %p179
      %p186 = scmp.eq.s32.totalorder %s18, 1
      %p187 = por %p185, %p186
      %p188 = scmp.ne.s32.totalorder %s180, %s183
      %p189 = scmp.eq.s32.totalorder %s18, 0
      %p190 = por %p188, %p189
      %p191 = scmp.ne.s32.totalorder %s180, %s183
      %p192 = scmp.eq.s32.totalorder %s23, 1
      %p193 = por %p191, %p192
      %p194 = scmp.ne.s32.totalorder %s183, %s184
      %p195 = scmp.eq.s32.totalorder %s23, 0
      %p196 = por %p194, %p195
      %p197 = scmp.ne.s32.totalorder %s183, %s184
      %p198 = scmp.eq.s32.totalorder %s24, 1
      %p199 = por %p197, %p198
      %p201 = scmp.ne.s32.totalorder %s184, %s200
      %p202 = scmp.eq.s32.totalorder %s24, 0
      %p203 = por %p201, %p202
      %p204 = scmp.le.s32.totalorder 1, %s18
      %p205 = scmp.lt.s32.totalorder %s18, 3
      %p206 = pnand %p204, %p205
      %p207 = pneg %p206
      // Predicated region
      $region9: #{tpu_custom_call.1} parent=5 // pred_check
        _
      $region10: #{tpu_custom_call.1} parent=5 // pred_check_branch
        %209 = sbr.rel (%p206) target = $region12
      $region11: #{tpu_custom_call.1} parent=5 // pred_region
        %s210 = ssub.s32 %s18, 1
        // Predicated region
        $region13: #{tpu_custom_call.1} parent=11 // pred_check
          %p211 = pneg %p65
        $region14: #{tpu_custom_call.1} parent=11 // pred_check_branch
          %213 = sbr.rel (%p211) target = $region16
        $region15: #{tpu_custom_call.1} parent=11 // pred_region
          _
        $region16: #{tpu_custom_call.1} parent=11 // pred_fallthru
          _
        // Predicated region
        $region17: #{tpu_custom_call.1} parent=11 // pred_check
          %p214 = pneg %p86
        $region18: #{tpu_custom_call.1} parent=11 // pred_check_branch
          %216 = sbr.rel (%p214) target = $region20
        $region19: #{tpu_custom_call.1} parent=11 // pred_region
          _
        $region20: #{tpu_custom_call.1} parent=11 // pred_fallthru
          _
        // Predicated region
        $region21: #{tpu_custom_call.1} parent=11 // pred_check
          %p217 = pneg %p107
        $region22: #{tpu_custom_call.1} parent=11 // pred_check_branch
          %219 = sbr.rel (%p217) target = $region24
        $region23: #{tpu_custom_call.1} parent=11 // pred_region
          _
        $region24: #{tpu_custom_call.1} parent=11 // pred_fallthru
          _
        // Predicated region
        $region25: #{tpu_custom_call.1} parent=11 // pred_check
          %p220 = pneg %p128
        $region26: #{tpu_custom_call.1} parent=11 // pred_check_branch
          %222 = sbr.rel (%p220) target = $region28
        $region27: #{tpu_custom_call.1} parent=11 // pred_region
          _
        $region28: #{tpu_custom_call.1} parent=11 // pred_fallthru
          _
        // Predicated region
        $region29: #{tpu_custom_call.1} parent=11 // pred_check
          %p223 = pneg %p149
        $region30: #{tpu_custom_call.1} parent=11 // pred_check_branch
          %225 = sbr.rel (%p223) target = $region32
        $region31: #{tpu_custom_call.1} parent=11 // pred_region
          _
        $region32: #{tpu_custom_call.1} parent=11 // pred_fallthru
          _
        // Predicated region
        $region33: #{tpu_custom_call.1} parent=11 // pred_check
          %p226 = pneg %p170
        $region34: #{tpu_custom_call.1} parent=11 // pred_check_branch
          %228 = sbr.rel (%p226) target = $region36
        $region35: #{tpu_custom_call.1} parent=11 // pred_region
          _
        $region36: #{tpu_custom_call.1} parent=11 // pred_fallthru
          _
      $region12: #{tpu_custom_call.1} parent=5 // pred_fallthru
        _
      %p229 = scmp.lt.s32.totalorder %s18, 2
      // Predicated region
      $region37: #{tpu_custom_call.1} parent=5 // pred_check
        %p230 = pneg %p229
      $region38: #{tpu_custom_call.1} parent=5 // pred_check_branch
        %232 = sbr.rel (%p230) target = $region40
      $region39: #{tpu_custom_call.1} parent=5 // pred_region
        // Predicated region
        $region41: #{tpu_custom_call.1} parent=39 // pred_check
          %p233 = pneg %p38
        $region42: #{tpu_custom_call.1} parent=39 // pred_check_branch
          %235 = sbr.rel (%p233) target = $region44
        $region43: #{tpu_custom_call.1} parent=39 // pred_region
          %s236 = smul.u32 32, %s18
          %s237 = ssub.s32 38, %s236
          %p238 = scmp.lt.s32.totalorder %s237, 32
          %s239 = scalar_select %p238, %s237, 32
          %s240 = smul.u32 128, %s239
          %p241 = scmp.lt.s32.totalorder %s236, 37
          %s242 = scalar_select %p241, %s236, 37
          %s243 = smul.addr %s242, 8
          %s244 = scalar_lea.vmem %s0, %s243
          %s245 = smul.u32 32, %s18
          %s246 = ssub.s32 38, %s245
          %p247 = scmp.lt.s32.totalorder %s246, 32
          %s248 = scalar_select %p247, %s246, 32
          %s249 = smul.u32 128, %s248
        $region44: #{tpu_custom_call.1} parent=39 // pred_fallthru
          _
      $region40: #{tpu_custom_call.1} parent=5 // pred_fallthru
        _
      %p250 = scmp.le.s32.totalorder 1, %s18
      %p251 = scmp.lt.s32.totalorder %s18, 3
      %p252 = pnand %p250, %p251
      %p253 = pneg %p252
      // Predicated region
      $region45: #{tpu_custom_call.1} parent=5 // pred_check
        _
      $region46: #{tpu_custom_call.1} parent=5 // pred_check_branch
        %255 = sbr.rel (%p252) target = $region48
      $region47: #{tpu_custom_call.1} parent=5 // pred_region
        %s256 = ssub.s32 %s18, 1
        %s257 = smul.u32 32, %s23
        %s258 = ssub.s32 38, %s257
        %p259 = scmp.lt.s32.totalorder %s258, 32
        %s260 = scalar_select %p259, %s258, 32
        %s261 = smul.u32 128, %s260
        %p262 = scmp.lt.s32.totalorder %s257, 37
        %s263 = scalar_select %p262, %s257, 37
        %s264 = smul.addr %s263, 8
        %s265 = scalar_lea.vmem %s0, %s264
        %p266 = pneg %p44
        %p267 = pneg %p41
        %p268 = pneg %p65
        %p269 = pneg %p62
        %p270 = pneg %p86
        %p271 = pneg %p83
        %p272 = pneg %p107
        %p273 = pneg %p104
        %p274 = pneg %p128
        %p275 = pneg %p125
        %p276 = pneg %p149
        %p277 = pneg %p146
        %p278 = pneg %p170
        %p279 = pneg %p167
        %p280 = pneg %p196
        %p281 = pneg %p193
        %s282 = sand.u32 %s183, 1
        %s283 = scalar_lea.sflag [#allocation4], %s282
        %s284 = sand.u32 %s183, 1
        %s285 = smul.addr %s284, 2
        %s286 = scalar_lea.vmem [#allocation3], %s285
        %s287 = smul.u32 32, %s23
        %s288 = ssub.s32 38, %s287
        %p289 = scmp.lt.s32.totalorder %s288, 32
        %s290 = scalar_select %p289, %s288, 32
        %s291 = smul.u32 128, %s290
        %p292 = scmp.lt.s32.totalorder %s287, 37
        %s293 = scalar_select %p292, %s287, 37
        %s294 = smul.addr %s293, 8
        %s295 = scalar_lea.vmem %s0, %s294
        %s296 = smul.u32 32, %s23
        %s297 = ssub.s32 38, %s296
        %p298 = scmp.lt.s32.totalorder %s297, 32
        %s299 = scalar_select %p298, %s297, 32
        %s300 = smul.u32 128, %s299
        %v302 = vld [vmem:[%s295] sm:$0xff]
        %v303 = vld [vmem:[%s295 + $0x8] sm:$0xff]
        %v304 = vld [vmem:[%s295 + $0x10] sm:$0xff]
        %v305 = vld [vmem:[%s295 + $0x18] sm:$0xff]
        %v306 = vld [vmem:[%s295 + $0x20] sm:$0xff]
        %v307 = vld [vmem:[%s295 + $0x28] sm:$0xff]
        %v308 = vld [vmem:[%s295 + $0x30] sm:$0xff]
        %v309 = vld [vmem:[%s295 + $0x38] sm:$0xff]
        %v310 = vld [vmem:[%s295 + $0x40] sm:$0xff]
        %v311 = vld [vmem:[%s295 + $0x48] sm:$0xff]
        %v312 = vld [vmem:[%s295 + $0x50] sm:$0xff]
        %v313 = vld [vmem:[%s295 + $0x58] sm:$0xff]
        %v314 = vld [vmem:[%s295 + $0x60] sm:$0xff]
        %v315 = vld [vmem:[%s295 + $0x68] sm:$0xff]
        %v316 = vld [vmem:[%s295 + $0x70] sm:$0xff]
        %v317 = vld [vmem:[%s295 + $0x78] sm:$0xff]
        %v318 = vld [vmem:[%s295 + $0x80] sm:$0xff]
        %v319 = vld [vmem:[%s295 + $0x88] sm:$0xff]
        %v320 = vld [vmem:[%s295 + $0x90] sm:$0xff]
        %v321 = vld [vmem:[%s295 + $0x98] sm:$0xff]
        %v322 = vld [vmem:[%s295 + $0xa0] sm:$0xff]
        %v323 = vld [vmem:[%s295 + $0xa8] sm:$0xff]
        %v324 = vld [vmem:[%s295 + $0xb0] sm:$0xff]
        %v325 = vld [vmem:[%s295 + $0xb8] sm:$0xff]
        %v326 = vld [vmem:[%s295 + $0xc0] sm:$0xff]
        %v327 = vld [vmem:[%s295 + $0xc8] sm:$0xff]
        %v328 = vld [vmem:[%s295 + $0xd0] sm:$0xff]
        %v329 = vld [vmem:[%s295 + $0xd8] sm:$0xff]
        %v330 = vld [vmem:[%s295 + $0xe0] sm:$0xff]
        %v331 = vld [vmem:[%s295 + $0xe8] sm:$0xff]
        %v332 = vld [vmem:[%s295 + $0xf0] sm:$0xff]
        %v333 = vld [vmem:[%s295 + $0xf8] sm:$0xff]
        %v334 = vpack.c.bf16 %v303, %v302
        %v335 = vpack.c.bf16 %v305, %v304
        %v336 = vpack.c.bf16 %v307, %v306
        %v337 = vpack.c.bf16 %v309, %v308
        %v338 = vpack.c.bf16 %v311, %v310
        %v339 = vpack.c.bf16 %v313, %v312
        %v340 = vpack.c.bf16 %v315, %v314
        %v341 = vpack.c.bf16 %v317, %v316
        %v342 = vpack.c.bf16 %v319, %v318
        %v343 = vpack.c.bf16 %v321, %v320
        %v344 = vpack.c.bf16 %v323, %v322
        %v345 = vpack.c.bf16 %v325, %v324
        %v346 = vpack.c.bf16 %v327, %v326
        %v347 = vpack.c.bf16 %v329, %v328
        %v348 = vpack.c.bf16 %v331, %v330
        %v349 = vpack.c.bf16 %v333, %v332
        %v350 = vld [vmem:[%s1] sm:$0xf]
        %v351 = vld [vmem:[%s1 + $0x4] sm:$0xf]
        %v352 = vld [vmem:[%s1 + $0x8] sm:$0xf]
        %v353 = vld [vmem:[%s1 + $0xc] sm:$0xf]
        %v354 = vld [vmem:[%s2] sm:$0x1]
        %v356 = vlaneseq
        %v357 = vshrl.u32 %v356, 7
        %v358 = vsub.s32 0, %v357
        %v359 = vrot.slane %v354, %v358
        %v365 = vunpack.c.l.b16 %v350
        %v366 = vunpack.c.l.b16 %v351
        %v367 = vunpack.c.l.b16 %v352
        %v368 = vunpack.c.l.b16 %v353
        %v369 = vpack.c.b16 %v366, %v365
        %v370 = vpack.c.b16 %v368, %v367
        %vm373 = vcmask 261120
        %v375 = vsel %vm373, %v334, 0
        %v378 = vsel %vm373, %v335, 0
        %v381 = vsel %vm373, %v336, 0
        %v384 = vsel %vm373, %v337, 0
        %v387 = vsel %vm373, %v338, 0
        %v390 = vsel %vm373, %v339, 0
        %v393 = vsel %vm373, %v340, 0
        %v396 = vsel %vm373, %v341, 0
        %v399 = vsel %vm373, %v342, 0
        %v402 = vsel %vm373, %v343, 0
        %v405 = vsel %vm373, %v344, 0
        %v408 = vsel %vm373, %v345, 0
        %v411 = vsel %vm373, %v346, 0
        %v414 = vsel %vm373, %v347, 0
        %v417 = vsel %vm373, %v348, 0
        %v420 = vsel %vm373, %v349, 0
        %422 = vmatprep.subr.bf16.mxu0 0
        %423 = vmatpush1.bf16.msra.mxu0 %v369
        %424 = vmatprep.subr.bf16.mxu0 0
        %425 = vmatpush1.bf16.msra.mxu0 %v370
        %426 = vmatprep.subr.bf16.mxu0 0
        %427 = vmatpush1.bf16.msra.mxu0 0
        %428 = vmatprep.subr.bf16.mxu0 0
        %429 = vmatpush1.bf16.msra.mxu0 0
        %430 = vmatprep.subr.bf16.mxu0 0
        %431 = vmatpush1.bf16.msra.mxu0 0
        %432 = vmatprep.subr.bf16.mxu0 0
        %433 = vmatpush1.bf16.msra.mxu0 0
        %434 = vmatprep.subr.bf16.mxu0 0
        %435 = vmatpush1.bf16.msra.mxu0 0
        %436 = vmatprep.subr.bf16.mxu0 0
        %437 = vmatpush1.bf16.msra.mxu0 0
        %438 = vmatprep.subr.bf16.mxu0 0
        %439 = vmatpush1.bf16.msra.mxu0 0
        %440 = vmatprep.subr.bf16.mxu0 0
        %441 = vmatpush1.bf16.msra.mxu0 0
        %442 = vmatprep.subr.bf16.mxu0 0
        %443 = vmatpush1.bf16.msra.mxu0 0
        %444 = vmatprep.subr.bf16.mxu0 0
        %445 = vmatpush1.bf16.msra.mxu0 0
        %446 = vmatprep.subr.bf16.mxu0 0
        %447 = vmatpush1.bf16.msra.mxu0 0
        %448 = vmatprep.subr.bf16.mxu0 0
        %449 = vmatpush1.bf16.msra.mxu0 0
        %450 = vmatprep.subr.bf16.mxu0 0
        %451 = vmatpush1.bf16.msra.mxu0 0
        %452 = vmatprep.subr.bf16.mxu0 0
        %453 = vmatpush1.bf16.msra.mxu0 0
        %454 = vmatprep.mubr.bf16.mxu0 0
        %455 = vmatmul.mubr.bf16.gmra.mrb[0].mxu0 %v375
        %v456 = vpop.f32.mrb[0].mxu0
        %v457 = vadd.f32 %v359, %v456
        %v458 = vpop.f32.mrb[0].mxu0
        %v459 = vpop.f32.mrb[0].mxu0
        %v460 = vadd.f32 %v359, %v459
        %v461 = vpop.f32.mrb[0].mxu0
        %462 = vmatprep.mubr.bf16.mxu0 0
        %463 = vmatmul.mubr.bf16.gmra.mrb[0].mxu0 %v378
        %v464 = vpop.f32.mrb[0].mxu0
        %v465 = vadd.f32 %v359, %v464
        %v466 = vpop.f32.mrb[0].mxu0
        %v467 = vpop.f32.mrb[0].mxu0
        %v468 = vadd.f32 %v359, %v467
        %v469 = vpop.f32.mrb[0].mxu0
        %470 = vmatprep.mubr.bf16.mxu0 0
        %471 = vmatmul.mubr.bf16.gmra.mrb[0].mxu0 %v381
        %v472 = vpop.f32.mrb[0].mxu0
        %v473 = vadd.f32 %v359, %v472
        %v474 = vpop.f32.mrb[0].mxu0
        %v475 = vpop.f32.mrb[0].mxu0
        %v476 = vadd.f32 %v359, %v475
        %v477 = vpop.f32.mrb[0].mxu0
        %478 = vmatprep.mubr.bf16.mxu0 0
        %479 = vmatmul.mubr.bf16.gmra.mrb[0].mxu0 %v384
        %v480 = vpop.f32.mrb[0].mxu0
        %v481 = vadd.f32 %v359, %v480
        %v482 = vpop.f32.mrb[0].mxu0
        %v483 = vpop.f32.mrb[0].mxu0
        %v484 = vadd.f32 %v359, %v483
        %v485 = vpop.f32.mrb[0].mxu0
        %486 = vmatprep.mubr.bf16.mxu0 0
        %487 = vmatmul.mubr.bf16.gmra.mrb[0].mxu0 %v387
        %v488 = vpop.f32.mrb[0].mxu0
        %v489 = vadd.f32 %v359, %v488
        %v490 = vpop.f32.mrb[0].mxu0
        %v491 = vpop.f32.mrb[0].mxu0
        %v492 = vadd.f32 %v359, %v491
        %v493 = vpop.f32.mrb[0].mxu0
        %494 = vmatprep.mubr.bf16.mxu0 0
        %495 = vmatmul.mubr.bf16.gmra.mrb[0].mxu0 %v390
        %v496 = vpop.f32.mrb[0].mxu0
        %v497 = vadd.f32 %v359, %v496
        %v498 = vpop.f32.mrb[0].mxu0
        %v499 = vpop.f32.mrb[0].mxu0
        %v500 = vadd.f32 %v359, %v499
        %v501 = vpop.f32.mrb[0].mxu0
        %502 = vmatprep.mubr.bf16.mxu0 0
        %503 = vmatmul.mubr.bf16.gmra.mrb[0].mxu0 %v393
        %v504 = vpop.f32.mrb[0].mxu0
        %v505 = vadd.f32 %v359, %v504
        %v506 = vpop.f32.mrb[0].mxu0
        %v507 = vpop.f32.mrb[0].mxu0
        %v508 = vadd.f32 %v359, %v507
        %v509 = vpop.f32.mrb[0].mxu0
        %510 = vmatprep.mubr.bf16.mxu0 0
        %511 = vmatmul.mubr.bf16.gmra.mrb[0].mxu0 %v396
        %v512 = vpop.f32.mrb[0].mxu0
        %v513 = vadd.f32 %v359, %v512
        %v514 = vpop.f32.mrb[0].mxu0
        %v515 = vpop.f32.mrb[0].mxu0
        %v516 = vadd.f32 %v359, %v515
        %v517 = vpop.f32.mrb[0].mxu0
        %518 = vmatprep.mubr.bf16.mxu0 0
        %519 = vmatmul.mubr.bf16.gmra.mrb[0].mxu0 %v399
        %v520 = vpop.f32.mrb[0].mxu0
        %v521 = vadd.f32 %v359, %v520
        %v522 = vpop.f32.mrb[0].mxu0
        %v523 = vpop.f32.mrb[0].mxu0
        %v524 = vadd.f32 %v359, %v523
        %v525 = vpop.f32.mrb[0].mxu0
        %526 = vmatprep.mubr.bf16.mxu0 0
        %527 = vmatmul.mubr.bf16.gmra.mrb[0].mxu0 %v402
        %v528 = vpop.f32.mrb[0].mxu0
        %v529 = vadd.f32 %v359, %v528
        %v530 = vpop.f32.mrb[0].mxu0
        %v531 = vpop.f32.mrb[0].mxu0
        %v532 = vadd.f32 %v359, %v531
        %v533 = vpop.f32.mrb[0].mxu0
        %534 = vmatprep.mubr.bf16.mxu0 0
        %535 = vmatmul.mubr.bf16.gmra.mrb[0].mxu0 %v405
        %v536 = vpop.f32.mrb[0].mxu0
        %v537 = vadd.f32 %v359, %v536
        %v538 = vpop.f32.mrb[0].mxu0
        %v539 = vpop.f32.mrb[0].mxu0
        %v540 = vadd.f32 %v359, %v539
        %v541 = vpop.f32.mrb[0].mxu0
        %542 = vmatprep.mubr.bf16.mxu0 0
        %543 = vmatmul.mubr.bf16.gmra.mrb[0].mxu0 %v408
        %v544 = vpop.f32.mrb[0].mxu0
        %v545 = vadd.f32 %v359, %v544
        %v546 = vpop.f32.mrb[0].mxu0
        %v547 = vpop.f32.mrb[0].mxu0
        %v548 = vadd.f32 %v359, %v547
        %v549 = vpop.f32.mrb[0].mxu0
        %550 = vmatprep.mubr.bf16.mxu0 0
        %551 = vmatmul.mubr.bf16.gmra.mrb[0].mxu0 %v411
        %v552 = vpop.f32.mrb[0].mxu0
        %v553 = vadd.f32 %v359, %v552
        %v554 = vpop.f32.mrb[0].mxu0
        %v555 = vpop.f32.mrb[0].mxu0
        %v556 = vadd.f32 %v359, %v555
        %v557 = vpop.f32.mrb[0].mxu0
        %558 = vmatprep.mubr.bf16.mxu0 0
        %559 = vmatmul.mubr.bf16.gmra.mrb[0].mxu0 %v414
        %v560 = vpop.f32.mrb[0].mxu0
        %v561 = vadd.f32 %v359, %v560
        %v562 = vpop.f32.mrb[0].mxu0
        %v563 = vpop.f32.mrb[0].mxu0
        %v564 = vadd.f32 %v359, %v563
        %v565 = vpop.f32.mrb[0].mxu0
        %566 = vmatprep.mubr.bf16.mxu0 0
        %567 = vmatmul.mubr.bf16.gmra.mrb[0].mxu0 %v417
        %v568 = vpop.f32.mrb[0].mxu0
        %v569 = vadd.f32 %v359, %v568
        %v570 = vpop.f32.mrb[0].mxu0
        %v571 = vpop.f32.mrb[0].mxu0
        %v572 = vadd.f32 %v359, %v571
        %v573 = vpop.f32.mrb[0].mxu0
        %574 = vmatprep.mubr.bf16.mxu0 0
        %575 = vmatmul.mubr.bf16.gmra.mrb[0].mxu0 %v420
        %v576 = vpop.f32.mrb[0].mxu0
        %v577 = vadd.f32 %v359, %v576
        %v578 = vpop.f32.mrb[0].mxu0
        %v579 = vpop.f32.mrb[0].mxu0
        %v580 = vadd.f32 %v359, %v579
        %v581 = vpop.f32.mrb[0].mxu0
        %582 = vdwg.mxu0
        %v583 = vmax.f32 %v457, 0.0
        %v584 = vmax.f32 %v460, 0.0
        %v585 = vmax.f32 %v465, 0.0
        %v586 = vmax.f32 %v468, 0.0
        %v587 = vmax.f32 %v473, 0.0
        %v588 = vmax.f32 %v476, 0.0
        %v589 = vmax.f32 %v481, 0.0
        %v590 = vmax.f32 %v484, 0.0
        %v591 = vmax.f32 %v489, 0.0
        %v592 = vmax.f32 %v492, 0.0
        %v593 = vmax.f32 %v497, 0.0
        %v594 = vmax.f32 %v500, 0.0
        %v595 = vmax.f32 %v505, 0.0
        %v596 = vmax.f32 %v508, 0.0
        %v597 = vmax.f32 %v513, 0.0
        %v598 = vmax.f32 %v516, 0.0
        %v599 = vmax.f32 %v521, 0.0
        %v600 = vmax.f32 %v524, 0.0
        %v601 = vmax.f32 %v529, 0.0
        %v602 = vmax.f32 %v532, 0.0
        %v603 = vmax.f32 %v537, 0.0
        %v604 = vmax.f32 %v540, 0.0
        %v605 = vmax.f32 %v545, 0.0
        %v606 = vmax.f32 %v548, 0.0
        %v607 = vmax.f32 %v553, 0.0
        %v608 = vmax.f32 %v556, 0.0
        %v609 = vmax.f32 %v561, 0.0
        %v610 = vmax.f32 %v564, 0.0
        %v611 = vmax.f32 %v569, 0.0
        %v612 = vmax.f32 %v572, 0.0
        %v613 = vmax.f32 %v577, 0.0
        %v614 = vmax.f32 %v580, 0.0
        %v615 = vpack.c.bf16 %v584, %v583
        %v616 = vpack.c.bf16 %v586, %v585
        %v617 = vpack.c.bf16 %v588, %v587
        %v618 = vpack.c.bf16 %v590, %v589
        %v619 = vpack.c.bf16 %v592, %v591
        %v620 = vpack.c.bf16 %v594, %v593
        %v621 = vpack.c.bf16 %v596, %v595
        %v622 = vpack.c.bf16 %v598, %v597
        %v623 = vpack.c.bf16 %v600, %v599
        %v624 = vpack.c.bf16 %v602, %v601
        %v625 = vpack.c.bf16 %v604, %v603
        %v626 = vpack.c.bf16 %v606, %v605
        %v627 = vpack.c.bf16 %v608, %v607
        %v628 = vpack.c.bf16 %v610, %v609
        %v629 = vpack.c.bf16 %v612, %v611
        %v630 = vpack.c.bf16 %v614, %v613
        %v631 = vld [vmem:[%s3] sm:$0xf]
        %v632 = vld [vmem:[%s3 + $0x4] sm:$0xf]
        %v633 = vld [vmem:[%s3 + $0x8] sm:$0xf]
        %v634 = vld [vmem:[%s3 + $0xc] sm:$0xf]
        %v635 = vld [vmem:[%s3 + $0x10] sm:$0xf]
        %v636 = vld [vmem:[%s3 + $0x14] sm:$0xf]
        %v637 = vld [vmem:[%s3 + $0x18] sm:$0xf]
        %v638 = vld [vmem:[%s3 + $0x1c] sm:$0xf]
        %v639 = vld [vmem:[%s4] sm:$0x1]
        %v641 = vlaneseq
        %v642 = vshrl.u32 %v641, 7
        %v643 = vsub.s32 0, %v642
        %v644 = vrot.slane %v639, %v643
        %v654 = vunpack.c.l.b16 %v631
        %v655 = vunpack.c.l.b16 %v632
        %v656 = vunpack.c.l.b16 %v633
        %v657 = vunpack.c.l.b16 %v634
        %v658 = vunpack.c.l.b16 %v635
        %v659 = vunpack.c.l.b16 %v636
        %v660 = vunpack.c.l.b16 %v637
        %v661 = vunpack.c.l.b16 %v638
        %v662 = vpack.c.b16 %v655, %v654
        %v663 = vpack.c.b16 %v657, %v656
        %v664 = vpack.c.b16 %v659, %v658
        %v665 = vpack.c.b16 %v661, %v660
        %vm670 = vcmask 523264
        %v672 = vsel %vm670, %v615, 0
        %v675 = vsel %vm670, %v616, 0
        %v678 = vsel %vm670, %v617, 0
        %v681 = vsel %vm670, %v618, 0
        %v684 = vsel %vm670, %v619, 0
        %v687 = vsel %vm670, %v620, 0
        %v690 = vsel %vm670, %v621, 0
        %v693 = vsel %vm670, %v622, 0
        %v696 = vsel %vm670, %v623, 0
        %v699 = vsel %vm670, %v624, 0
        %v702 = vsel %vm670, %v625, 0
        %v705 = vsel %vm670, %v626, 0
        %v708 = vsel %vm670, %v627, 0
        %v711 = vsel %vm670, %v628, 0
        %v714 = vsel %vm670, %v629, 0
        %v717 = vsel %vm670, %v630, 0
        %719 = vmatprep.subr.bf16.mxu0 0
        %720 = vmatpush1.bf16.msra.mxu0 %v662
        %721 = vmatprep.subr.bf16.mxu0 0
        %722 = vmatpush1.bf16.msra.mxu0 %v663
        %723 = vmatprep.subr.bf16.mxu0 0
        %724 = vmatpush1.bf16.msra.mxu0 %v664
        %725 = vmatprep.subr.bf16.mxu0 0
        %726 = vmatpush1.bf16.msra.mxu0 %v665
        %727 = vmatprep.subr.bf16.mxu0 0
        %728 = vmatpush1.bf16.msra.mxu0 0
        %729 = vmatprep.subr.bf16.mxu0 0
        %730 = vmatpush1.bf16.msra.mxu0 0
        %731 = vmatprep.subr.bf16.mxu0 0
        %732 = vmatpush1.bf16.msra.mxu0 0
        %733 = vmatprep.subr.bf16.mxu0 0
        %734 = vmatpush1.bf16.msra.mxu0 0
        %735 = vmatprep.subr.bf16.mxu0 0
        %736 = vmatpush1.bf16.msra.mxu0 0
        %737 = vmatprep.subr.bf16.mxu0 0
        %738 = vmatpush1.bf16.msra.mxu0 0
        %739 = vmatprep.subr.bf16.mxu0 0
        %740 = vmatpush1.bf16.msra.mxu0 0
        %741 = vmatprep.subr.bf16.mxu0 0
        %742 = vmatpush1.bf16.msra.mxu0 0
        %743 = vmatprep.subr.bf16.mxu0 0
        %744 = vmatpush1.bf16.msra.mxu0 0
        %745 = vmatprep.subr.bf16.mxu0 0
        %746 = vmatpush1.bf16.msra.mxu0 0
        %747 = vmatprep.subr.bf16.mxu0 0
        %748 = vmatpush1.bf16.msra.mxu0 0
        %749 = vmatprep.subr.bf16.mxu0 0
        %750 = vmatpush1.bf16.msra.mxu0 0
        %751 = vmatprep.mubr.bf16.mxu0 0
        %752 = vmatmul.mubr.bf16.gmra.mrb[0].mxu0 %v672
        %v753 = vpop.f32.mrb[0].mxu0
        %v754 = vadd.f32 %v644, %v753
        %v755 = vpop.f32.mrb[0].mxu0
        %v756 = vpop.f32.mrb[0].mxu0
        %v757 = vadd.f32 %v644, %v756
        %v758 = vpop.f32.mrb[0].mxu0
        %759 = vmatprep.mubr.bf16.mxu0 0
        %760 = vmatmul.mubr.bf16.gmra.mrb[0].mxu0 %v675
        %v761 = vpop.f32.mrb[0].mxu0
        %v762 = vadd.f32 %v644, %v761
        %v763 = vpop.f32.mrb[0].mxu0
        %v764 = vpop.f32.mrb[0].mxu0
        %v765 = vadd.f32 %v644, %v764
        %v766 = vpop.f32.mrb[0].mxu0
        %767 = vmatprep.mubr.bf16.mxu0 0
        %768 = vmatmul.mubr.bf16.gmra.mrb[0].mxu0 %v678
        %v769 = vpop.f32.mrb[0].mxu0
        %v770 = vadd.f32 %v644, %v769
        %v771 = vpop.f32.mrb[0].mxu0
        %v772 = vpop.f32.mrb[0].mxu0
        %v773 = vadd.f32 %v644, %v772
        %v774 = vpop.f32.mrb[0].mxu0
        %775 = vmatprep.mubr.bf16.mxu0 0
        %776 = vmatmul.mubr.bf16.gmra.mrb[0].mxu0 %v681
        %v777 = vpop.f32.mrb[0].mxu0
        %v778 = vadd.f32 %v644, %v777
        %v779 = vpop.f32.mrb[0].mxu0
        %v780 = vpop.f32.mrb[0].mxu0
        %v781 = vadd.f32 %v644, %v780
        %v782 = vpop.f32.mrb[0].mxu0
        %783 = vmatprep.mubr.bf16.mxu0 0
        %784 = vmatmul.mubr.bf16.gmra.mrb[0].mxu0 %v684
        %v785 = vpop.f32.mrb[0].mxu0
        %v786 = vadd.f32 %v644, %v785
        %v787 = vpop.f32.mrb[0].mxu0
        %v788 = vpop.f32.mrb[0].mxu0
        %v789 = vadd.f32 %v644, %v788
        %v790 = vpop.f32.mrb[0].mxu0
        %791 = vmatprep.mubr.bf16.mxu0 0
        %792 = vmatmul.mubr.bf16.gmra.mrb[0].mxu0 %v687
        %v793 = vpop.f32.mrb[0].mxu0
        %v794 = vadd.f32 %v644, %v793
        %v795 = vpop.f32.mrb[0].mxu0
        %v796 = vpop.f32.mrb[0].mxu0
        %v797 = vadd.f32 %v644, %v796
        %v798 = vpop.f32.mrb[0].mxu0
        %799 = vmatprep.mubr.bf16.mxu0 0
        %800 = vmatmul.mubr.bf16.gmra.mrb[0].mxu0 %v690
        %v801 = vpop.f32.mrb[0].mxu0
        %v802 = vadd.f32 %v644, %v801
        %v803 = vpop.f32.mrb[0].mxu0
        %v804 = vpop.f32.mrb[0].mxu0
        %v805 = vadd.f32 %v644, %v804
        %v806 = vpop.f32.mrb[0].mxu0
        %807 = vmatprep.mubr.bf16.mxu0 0
        %808 = vmatmul.mubr.bf16.gmra.mrb[0].mxu0 %v693
        %v809 = vpop.f32.mrb[0].mxu0
        %v810 = vadd.f32 %v644, %v809
        %v811 = vpop.f32.mrb[0].mxu0
        %v812 = vpop.f32.mrb[0].mxu0
        %v813 = vadd.f32 %v644, %v812
        %v814 = vpop.f32.mrb[0].mxu0
        %815 = vmatprep.mubr.bf16.mxu0 0
        %816 = vmatmul.mubr.bf16.gmra.mrb[0].mxu0 %v696
        %v817 = vpop.f32.mrb[0].mxu0
        %v818 = vadd.f32 %v644, %v817
        %v819 = vpop.f32.mrb[0].mxu0
        %v820 = vpop.f32.mrb[0].mxu0
        %v821 = vadd.f32 %v644, %v820
        %v822 = vpop.f32.mrb[0].mxu0
        %823 = vmatprep.mubr.bf16.mxu0 0
        %824 = vmatmul.mubr.bf16.gmra.mrb[0].mxu0 %v699
        %v825 = vpop.f32.mrb[0].mxu0
        %v826 = vadd.f32 %v644, %v825
        %v827 = vpop.f32.mrb[0].mxu0
        %v828 = vpop.f32.mrb[0].mxu0
        %v829 = vadd.f32 %v644, %v828
        %v830 = vpop.f32.mrb[0].mxu0
        %831 = vmatprep.mubr.bf16.mxu0 0
        %832 = vmatmul.mubr.bf16.gmra.mrb[0].mxu0 %v702
        %v833 = vpop.f32.mrb[0].mxu0
        %v834 = vadd.f32 %v644, %v833
        %v835 = vpop.f32.mrb[0].mxu0
        %v836 = vpop.f32.mrb[0].mxu0
        %v837 = vadd.f32 %v644, %v836
        %v838 = vpop.f32.mrb[0].mxu0
        %839 = vmatprep.mubr.bf16.mxu0 0
        %840 = vmatmul.mubr.bf16.gmra.mrb[0].mxu0 %v705
        %v841 = vpop.f32.mrb[0].mxu0
        %v842 = vadd.f32 %v644, %v841
        %v843 = vpop.f32.mrb[0].mxu0
        %v844 = vpop.f32.mrb[0].mxu0
        %v845 = vadd.f32 %v644, %v844
        %v846 = vpop.f32.mrb[0].mxu0
        %847 = vmatprep.mubr.bf16.mxu0 0
        %848 = vmatmul.mubr.bf16.gmra.mrb[0].mxu0 %v708
        %v849 = vpop.f32.mrb[0].mxu0
        %v850 = vadd.f32 %v644, %v849
        %v851 = vpop.f32.mrb[0].mxu0
        %v852 = vpop.f32.mrb[0].mxu0
        %v853 = vadd.f32 %v644, %v852
        %v854 = vpop.f32.mrb[0].mxu0
        %855 = vmatprep.mubr.bf16.mxu0 0
        %856 = vmatmul.mubr.bf16.gmra.mrb[0].mxu0 %v711
        %v857 = vpop.f32.mrb[0].mxu0
        %v858 = vadd.f32 %v644, %v857
        %v859 = vpop.f32.mrb[0].mxu0
        %v860 = vpop.f32.mrb[0].mxu0
        %v861 = vadd.f32 %v644, %v860
        %v862 = vpop.f32.mrb[0].mxu0
        %863 = vmatprep.mubr.bf16.mxu0 0
        %864 = vmatmul.mubr.bf16.gmra.mrb[0].mxu0 %v714
        %v865 = vpop.f32.mrb[0].mxu0
        %v866 = vadd.f32 %v644, %v865
        %v867 = vpop.f32.mrb[0].mxu0
        %v868 = vpop.f32.mrb[0].mxu0
        %v869 = vadd.f32 %v644, %v868
        %v870 = vpop.f32.mrb[0].mxu0
        %871 = vmatprep.mubr.bf16.mxu0 0
        %872 = vmatmul.mubr.bf16.gmra.mrb[0].mxu0 %v717
        %v873 = vpop.f32.mrb[0].mxu0
        %v874 = vadd.f32 %v644, %v873
        %v875 = vpop.f32.mrb[0].mxu0
        %v876 = vpop.f32.mrb[0].mxu0
        %v877 = vadd.f32 %v644, %v876
        %v878 = vpop.f32.mrb[0].mxu0
        %879 = vdwg.mxu0
        %v880 = vmax.f32 %v754, 0.0
        %v881 = vmax.f32 %v757, 0.0
        %v882 = vmax.f32 %v762, 0.0
        %v883 = vmax.f32 %v765, 0.0
        %v884 = vmax.f32 %v770, 0.0
        %v885 = vmax.f32 %v773, 0.0
        %v886 = vmax.f32 %v778, 0.0
        %v887 = vmax.f32 %v781, 0.0
        %v888 = vmax.f32 %v786, 0.0
        %v889 = vmax.f32 %v789, 0.0
        %v890 = vmax.f32 %v794, 0.0
        %v891 = vmax.f32 %v797, 0.0
        %v892 = vmax.f32 %v802, 0.0
        %v893 = vmax.f32 %v805, 0.0
        %v894 = vmax.f32 %v810, 0.0
        %v895 = vmax.f32 %v813, 0.0
        %v896 = vmax.f32 %v818, 0.0
        %v897 = vmax.f32 %v821, 0.0
        %v898 = vmax.f32 %v826, 0.0
        %v899 = vmax.f32 %v829, 0.0
        %v900 = vmax.f32 %v834, 0.0
        %v901 = vmax.f32 %v837, 0.0
        %v902 = vmax.f32 %v842, 0.0
        %v903 = vmax.f32 %v845, 0.0
        %v904 = vmax.f32 %v850, 0.0
        %v905 = vmax.f32 %v853, 0.0
        %v906 = vmax.f32 %v858, 0.0
        %v907 = vmax.f32 %v861, 0.0
        %v908 = vmax.f32 %v866, 0.0
        %v909 = vmax.f32 %v869, 0.0
        %v910 = vmax.f32 %v874, 0.0
        %v911 = vmax.f32 %v877, 0.0
        %v912 = vld [vmem:[%s5] sm:$0xf]
        %v913 = vpack.c.bf16 %v881, %v880
        %v914 = vpack.c.bf16 %v883, %v882
        %v915 = vpack.c.bf16 %v885, %v884
        %v916 = vpack.c.bf16 %v887, %v886
        %v917 = vpack.c.bf16 %v889, %v888
        %v918 = vpack.c.bf16 %v891, %v890
        %v919 = vpack.c.bf16 %v893, %v892
        %v920 = vpack.c.bf16 %v895, %v894
        %v921 = vpack.c.bf16 %v897, %v896
        %v922 = vpack.c.bf16 %v899, %v898
        %v923 = vpack.c.bf16 %v901, %v900
        %v924 = vpack.c.bf16 %v903, %v902
        %v925 = vpack.c.bf16 %v905, %v904
        %v926 = vpack.c.bf16 %v907, %v906
        %v927 = vpack.c.bf16 %v909, %v908
        %v928 = vpack.c.bf16 %v911, %v910
        %v930 = vsel %vm373, %v912, 0
        %v933 = vsel %vm373, %v913, 0
        %v936 = vsel %vm373, %v914, 0
        %v939 = vsel %vm373, %v915, 0
        %v942 = vsel %vm373, %v916, 0
        %v945 = vsel %vm373, %v917, 0
        %v948 = vsel %vm373, %v918, 0
        %v951 = vsel %vm373, %v919, 0
        %v954 = vsel %vm373, %v920, 0
        %v957 = vsel %vm373, %v921, 0
        %v960 = vsel %vm373, %v922, 0
        %v963 = vsel %vm373, %v923, 0
        %v966 = vsel %vm373, %v924, 0
        %v969 = vsel %vm373, %v925, 0
        %v972 = vsel %vm373, %v926, 0
        %v975 = vsel %vm373, %v927, 0
        %v978 = vsel %vm373, %v928, 0
        %980 = vmatprep.subr.bf16.mxu0 0
        %981 = vmatpush1.bf16.xpose.msra.mxu0 %v933
        %982 = vmatprep.subr.bf16.mxu0 0
        %983 = vmatpush1.bf16.xpose.msra.mxu0 %v936
        %984 = vmatprep.subr.bf16.mxu0 0
        %985 = vmatpush1.bf16.xpose.msra.mxu0 %v939
        %986 = vmatprep.subr.bf16.mxu0 0
        %987 = vmatpush1.bf16.xpose.msra.mxu0 %v942
        %988 = vmatprep.subr.bf16.mxu0 0
        %989 = vmatpush1.bf16.xpose.msra.mxu0 %v945
        %990 = vmatprep.subr.bf16.mxu0 0
        %991 = vmatpush1.bf16.xpose.msra.mxu0 %v948
        %992 = vmatprep.subr.bf16.mxu0 0
        %993 = vmatpush1.bf16.xpose.msra.mxu0 %v951
        %994 = vmatprep.subr.bf16.mxu0 0
        %995 = vmatpush1.bf16.xpose.msra.mxu0 %v954
        %996 = vmatprep.subr.bf16.mxu0 0
        %997 = vmatpush1.bf16.xpose.msra.mxu0 %v957
        %998 = vmatprep.subr.bf16.mxu0 0
        %999 = vmatpush1.bf16.xpose.msra.mxu0 %v960
        %1000 = vmatprep.subr.bf16.mxu0 0
        %1001 = vmatpush1.bf16.xpose.msra.mxu0 %v963
        %1002 = vmatprep.subr.bf16.mxu0 0
        %1003 = vmatpush1.bf16.xpose.msra.mxu0 %v966
        %1004 = vmatprep.subr.bf16.mxu0 0
        %1005 = vmatpush1.bf16.xpose.msra.mxu0 %v969
        %1006 = vmatprep.subr.bf16.mxu0 0
        %1007 = vmatpush1.bf16.xpose.msra.mxu0 %v972
        %1008 = vmatprep.subr.bf16.mxu0 0
        %1009 = vmatpush1.bf16.xpose.msra.mxu0 %v975
        %1010 = vmatprep.subr.bf16.mxu0 0
        %1011 = vmatpush1.bf16.xpose.msra.mxu0 %v978
        %1012 = vmatprep.mubr.bf16.mxu0 0
        %1013 = vmatmul.mubr.bf16.gmra.mrb[0].mxu0 %v930
        %v1014 = vpop.f32.mrb[0].mxu0
        %v1015 = vadd.f32 0.0, %v1014
        %v1016 = vpop.f32.mrb[0].mxu0
        %v1017 = vadd.f32 0.0, %v1016
        %v1018 = vpop.f32.mrb[0].mxu0
        %v1019 = vpop.f32.mrb[0].mxu0
        %1020 = vdwg.mxu0
        %v1021 = vld [vmem:[#allocation2] sm:$0x1]
        %1023 = vset.pattern.permute.xlu0 0
        %1024 = vperm.xlu0 %1023, %v1021
        %v1025 = vpop.permute.xlu0 %1024
        %v1027 = vlaneseq
        %v1028 = vshrl.u32 %v1027, 7
        %v1029 = vsub.s32 0, %v1028
        %v1030 = vrot.slane %v1025, %v1029
        %v1031 = vadd.f32 %v1015, %v1030
        %v1032 = vadd.f32 %v1017, %v1030
        %v1033 = vxor.u32 %v1031, 2147483648
        %v1034 = vxor.u32 %v1032, 2147483648
        %v1035 = vmul.f32 %v1033, 1.442695
        %v1036 = vpow.pop %v1035
        %v1037 = vmul.f32 %v1034, 1.442695
        %v1038 = vpow.pop %v1037
        %v1039 = vadd.f32 %v1036, 1.0
        %v1040 = vadd.f32 %v1038, 1.0
        %v1041 = vrcp.pop %v1039
        %v1042 = vmul.f32 1.0, %v1041
        %v1043 = vrcp.pop %v1040
        %v1044 = vmul.f32 1.0, %v1043
        %v1047 = vcombine.low %v1042, %v1044
        %v1049 = vunpack.c.l.s4 1966171168
        %v1050 = vunpack.c.0.s8 %v1049
        %v1051 = vlaneseq
        %v1052 = vshrl.u32 %v1051, 7
        %v1053 = vsub.s32 %v1050, %v1052
        %v1054 = vrot.slane %v1047, %v1053
        %v1056 = vunpack.c.l.s4 1966171168
        %v1057 = vunpack.c.0.s8 %v1056
        %v1058 = vlaneseq
        %v1059 = vshrl.u32 %v1058, 7
        %v1060 = vsub.s32 %v1057, %v1059
        %v1061 = vrot.slane %v1054, %v1060
        %v1063 = vlaneseq
        %vm1064 = vcmp.ge.s32.totalorder %v1063, 0
        %vm1065 = vcmp.lt.s32.totalorder %v1063, 256
        %vm1066 = vmand %vm1064, %vm1065
        %1067 = vst.msk [vmem:[%s286] sm:$0x3] %vm1066, %v1061
        %s1068 = sand.u32 %s183, 1
        %s1069 = scalar_lea.sflag [#allocation4], %s1068
        %s1070 = sand.u32 %s183, 1
        %s1071 = smul.addr %s1070, 2
        %s1072 = scalar_lea.vmem [#allocation3], %s1071
        // Predicated region
        $region49: #{tpu_custom_call.1} parent=47 // pred_check
          %p1073 = pneg %p193
        $region50: #{tpu_custom_call.1} parent=47 // pred_check_branch
          %1075 = sbr.rel (%p1073) target = $region52
        $region51: #{tpu_custom_call.1} parent=47 // pred_region
          %s1077 = ssub.s32 32, 32
          %1078 = vsyncadd %s1069, %s1077
          %s1079 = smul.addr %s23, 2
          %s1080 = smul.addr %s1079, 16
          %s1081 = scalar_lea.hbm %s7, %s1080
          %s1083 = sshll.u32 %s1072, 4
          %s1084 = int_to_ptr.vmem [resolvable:$true] %s1083
          %1086 = dma.vmem_to_hbm [thread:$0]  %s1084, 32, %s1081, %s1069
        $region52: #{tpu_custom_call.1} parent=47 // pred_fallthru
          _
      $region48: #{tpu_custom_call.1} parent=5 // pred_fallthru
        _
      %p1087 = scmp.le.s32.totalorder 2, %s18
      // Predicated region
      $region53: #{tpu_custom_call.1} parent=5 // pred_check
        %p1088 = pneg %p1087
      $region54: #{tpu_custom_call.1} parent=5 // pred_check_branch
        %1090 = sbr.rel (%p1088) target = $region56
      $region55: #{tpu_custom_call.1} parent=5 // pred_region
        %s1091 = ssub.s32 %s18, 2
        // Predicated region
        $region57: #{tpu_custom_call.1} parent=55 // pred_check
          %p1092 = pneg %p199
        $region58: #{tpu_custom_call.1} parent=55 // pred_check_branch
          %1094 = sbr.rel (%p1092) target = $region60
        $region59: #{tpu_custom_call.1} parent=55 // pred_region
          %s1095 = sand.u32 %s184, 1
          %s1096 = scalar_lea.sflag [#allocation4], %s1095
          %s1097 = sand.u32 %s184, 1
          %s1098 = smul.addr %s1097, 2
          %s1099 = scalar_lea.vmem [#allocation3], %s1098
          %1100 = dma.done %s1096, 32
        $region60: #{tpu_custom_call.1} parent=55 // pred_fallthru
          _
      $region56: #{tpu_custom_call.1} parent=5 // pred_fallthru
        _
    $region6: #{tpu_custom_call.1} parent=1 // loop_footer
      %s22 = sadd.s32 1, %s18
    $region7: #{tpu_custom_call.1} parent=1 // loop_footer_branch
      %17 = sbr.rel target = $region3
    $region8: #{tpu_custom_call.1} parent=1 // loop_exit
      _
    %1101 = vsyncpa [#allocation4], 1
    %s1102 = scalar_lea.sflag [#allocation4], 1
    %1103 = vsyncpa %s1102, 1

// kernel: tpu_custom_call.1
$region0: #{tpu_custom_call.1}
  #allocation0 [shape = 'u32[]', space=smem, size = 0x4, offset = 0x4, fixed_abs, tag = 'smem constant byte address 0x4 - core index']
  #allocation1 [shape = 'u32[144,128]{1,0:T(1,128)}', space=vmem, size = 0x12000, scoped, tag = 'internal scratch']
  #allocation2 [shape = 'f32[1,1]{1,0:T(1,128)S(1)}', space=vmem, size = 0x200, scoped, tag = 'scoped memory for tpu_custom_call.1']
  %s0 = inlined_call_operand.vmem [shape: f32[300,32], index: 0, kind: input, shape index: {}]
  %s1 = inlined_call_operand.vmem [shape: bf16[32,64], index: 1, kind: input, shape index: {}]
  %s2 = inlined_call_operand.vmem [shape: f32[1,64], index: 2, kind: input, shape index: {}]
  %s3 = inlined_call_operand.vmem [shape: bf16[64,32], index: 3, kind: input, shape index: {}]
  %s4 = inlined_call_operand.vmem [shape: f32[1,32], index: 4, kind: input, shape index: {}]
  %s5 = inlined_call_operand.vmem [shape: bf16[8,32], index: 5, kind: input, shape index: {}]
  %s6 = inlined_call_operand.<no memory space> [shape: f32[1,1], index: 6, kind: input, shape index: {}]
  %s7 = inlined_call_operand.hbm [shape: f32[2,1,256], index: 7, kind: output, shape index: {}]
  %s8 = sld [smem:[#allocation0]]
  $region61: #{tpu_custom_call.1} parent=0
    _
  %s10 = ssub.s32 1, %s8
  %s11 = scalar_select 0, %s10, %s8
  %v12 = vstv %s6
  %13 = vst [vmem:[#allocation2] sm:$0x1] %v12
  $region1: #{tpu_custom_call.1} parent=0
    #allocation3 [shape = 'u8[2048]{0}', space=vmem, size = 0x800, scoped, tag = 'output window, operand 0']
    #allocation4 [shape = 's32[2]{0}', space=sflag, size = 0x8, scoped, tag = 'scoped memory for tpu_custom_call.1']
    %14 = vsyncpa [#allocation4], 0
    %s15 = scalar_lea.sflag [#allocation4], 1
    %16 = vsyncpa %s15, 0
    loop: start=0, step=1, limit=4
    $region2: #{tpu_custom_call.1} parent=1 // loop_pre_header
      _
    $region3: #{tpu_custom_call.1} parent=1 // loop_header
      %s18 = sphi 0, %s22
      %p19 = scmp.ge.s32.totalorder %s18, 4
      %s28 = sphi 0, %s30
      %s31 = sphi 0, %s28
      %s32 = sphi 0, %s31
      %s48 = sphi 0, %s32
      %s52 = sphi 0, %s52
      %s54 = sphi 0, %s52
      %s55 = sphi 0, %s54
      %s69 = sphi 0, %s55
      %s73 = sphi 0, %s73
      %s75 = sphi 0, %s73
      %s76 = sphi 0, %s75
      %s90 = sphi 0, %s76
      %s94 = sphi 0, %s94
      %s96 = sphi 0, %s94
      %s97 = sphi 0, %s96
      %s111 = sphi 0, %s97
      %s115 = sphi 0, %s115
      %s117 = sphi 0, %s115
      %s118 = sphi 0, %s117
      %s132 = sphi 0, %s118
      %s136 = sphi 0, %s136
      %s138 = sphi 0, %s136
      %s139 = sphi 0, %s138
      %s153 = sphi 0, %s139
      %s157 = sphi 0, %s157
      %s159 = sphi 0, %s157
      %s160 = sphi 0, %s159
      %s174 = sphi 0, %s160
      %s180 = sphi 0, %s182
      %s183 = sphi 0, %s180
      %s184 = sphi 0, %s183
      %s200 = sphi 0, %s184
    $region4: #{tpu_custom_call.1} parent=1 // loop_header_branch
      %21 = sbr.rel (%p19) target = $region8
    $region5: #{tpu_custom_call.1} parent=1 // loop_body
      %s23 = ssub.s32 %s18, 1
      %s24 = ssub.s32 %s18, 2
      %s25 = sadd.s32 %s18, 1
      %s26 = ssub.s32 %s18, %s25
      %p27 = scmp.eq.s32.totalorder %s26, 0
      %s29 = sadd.s32 %s28, 1
      %s30 = scalar_select %p27, %s28, %s29
      %p33 = pneg %p27
      %p34 = scmp.eq.s32.totalorder %s18, 1
      %p35 = por %p33, %p34
      %p36 = scmp.ne.s32.totalorder %s28, %s31
      %p37 = scmp.eq.s32.totalorder %s18, 0
      %p38 = por %p36, %p37
      %p39 = scmp.ne.s32.totalorder %s28, %s31
      %p40 = scmp.eq.s32.totalorder %s23, 1
      %p41 = por %p39, %p40
      %p42 = scmp.ne.s32.totalorder %s31, %s32
      %p43 = scmp.eq.s32.totalorder %s23, 0
      %p44 = por %p42, %p43
      %p45 = scmp.ne.s32.totalorder %s31, %s32
      %p46 = scmp.eq.s32.totalorder %s24, 1
      %p47 = por %p45, %p46
      %p49 = scmp.ne.s32.totalorder %s32, %s48
      %p50 = scmp.eq.s32.totalorder %s24, 0
      %p51 = por %p49, %p50
      %s53 = sadd.s32 %s52, 1
      %p56 = scmp.eq.s32.totalorder %s18, 1
      %p57 = scmp.ne.s32.totalorder %s52, %s54
      %p58 = scmp.eq.s32.totalorder %s18, 0
      %p59 = por %p57, %p58
      %p60 = scmp.ne.s32.totalorder %s52, %s54
      %p61 = scmp.eq.s32.totalorder %s23, 1
      %p62 = por %p60, %p61
      %p63 = scmp.ne.s32.totalorder %s54, %s55
      %p64 = scmp.eq.s32.totalorder %s23, 0
      %p65 = por %p63, %p64
      %p66 = scmp.ne.s32.totalorder %s54, %s55
      %p67 = scmp.eq.s32.totalorder %s24, 1
      %p68 = por %p66, %p67
      %p70 = scmp.ne.s32.totalorder %s55, %s69
      %p71 = scmp.eq.s32.totalorder %s24, 0
      %p72 = por %p70, %p71
      %s74 = sadd.s32 %s73, 1
      %p77 = scmp.eq.s32.totalorder %s18, 1
      %p78 = scmp.ne.s32.totalorder %s73, %s75
      %p79 = scmp.eq.s32.totalorder %s18, 0
      %p80 = por %p78, %p79
      %p81 = scmp.ne.s32.totalorder %s73, %s75
      %p82 = scmp.eq.s32.totalorder %s23, 1
      %p83 = por %p81, %p82
      %p84 = scmp.ne.s32.totalorder %s75, %s76
      %p85 = scmp.eq.s32.totalorder %s23, 0
      %p86 = por %p84, %p85
      %p87 = scmp.ne.s32.totalorder %s75, %s76
      %p88 = scmp.eq.s32.totalorder %s24, 1
      %p89 = por %p87, %p88
      %p91 = scmp.ne.s32.totalorder %s76, %s90
      %p92 = scmp.eq.s32.totalorder %s24, 0
      %p93 = por %p91, %p92
      %s95 = sadd.s32 %s94, 1
      %p98 = scmp.eq.s32.totalorder %s18, 1
      %p99 = scmp.ne.s32.totalorder %s94, %s96
      %p100 = scmp.eq.s32.totalorder %s18, 0
      %p101 = por %p99, %p100
      %p102 = scmp.ne.s32.totalorder %s94, %s96
      %p103 = scmp.eq.s32.totalorder %s23, 1
      %p104 = por %p102, %p103
      %p105 = scmp.ne.s32.totalorder %s96, %s97
      %p106 = scmp.eq.s32.totalorder %s23, 0
      %p107 = por %p105, %p106
      %p108 = scmp.ne.s32.totalorder %s96, %s97
      %p109 = scmp.eq.s32.totalorder %s24, 1
      %p110 = por %p108, %p109
      %p112 = scmp.ne.s32.totalorder %s97, %s111
      %p113 = scmp.eq.s32.totalorder %s24, 0
      %p114 = por %p112, %p113
      %s116 = sadd.s32 %s115, 1
      %p119 = scmp.eq.s32.totalorder %s18, 1
      %p120 = scmp.ne.s32.totalorder %s115, %s117
      %p121 = scmp.eq.s32.totalorder %s18, 0
      %p122 = por %p120, %p121
      %p123 = scmp.ne.s32.totalorder %s115, %s117
      %p124 = scmp.eq.s32.totalorder %s23, 1
      %p125 = por %p123, %p124
      %p126 = scmp.ne.s32.totalorder %s117, %s118
      %p127 = scmp.eq.s32.totalorder %s23, 0
      %p128 = por %p126, %p127
      %p129 = scmp.ne.s32.totalorder %s117, %s118
      %p130 = scmp.eq.s32.totalorder %s24, 1
      %p131 = por %p129, %p130
      %p133 = scmp.ne.s32.totalorder %s118, %s132
      %p134 = scmp.eq.s32.totalorder %s24, 0
      %p135 = por %p133, %p134
      %s137 = sadd.s32 %s136, 1
      %p140 = scmp.eq.s32.totalorder %s18, 1
      %p141 = scmp.ne.s32.totalorder %s136, %s138
      %p142 = scmp.eq.s32.totalorder %s18, 0
      %p143 = por %p141, %p142
      %p144 = scmp.ne.s32.totalorder %s136, %s138
      %p145 = scmp.eq.s32.totalorder %s23, 1
      %p146 = por %p144, %p145
      %p147 = scmp.ne.s32.totalorder %s138, %s139
      %p148 = scmp.eq.s32.totalorder %s23, 0
      %p149 = por %p147, %p148
      %p150 = scmp.ne.s32.totalorder %s138, %s139
      %p151 = scmp.eq.s32.totalorder %s24, 1
      %p152 = por %p150, %p151
      %p154 = scmp.ne.s32.totalorder %s139, %s153
      %p155 = scmp.eq.s32.totalorder %s24, 0
      %p156 = por %p154, %p155
      %s158 = sadd.s32 %s157, 1
      %p161 = scmp.eq.s32.totalorder %s18, 1
      %p162 = scmp.ne.s32.totalorder %s157, %s159
      %p163 = scmp.eq.s32.totalorder %s18, 0
      %p164 = por %p162, %p163
      %p165 = scmp.ne.s32.totalorder %s157, %s159
      %p166 = scmp.eq.s32.totalorder %s23, 1
      %p167 = por %p165, %p166
      %p168 = scmp.ne.s32.totalorder %s159, %s160
      %p169 = scmp.eq.s32.totalorder %s23, 0
      %p170 = por %p168, %p169
      %p171 = scmp.ne.s32.totalorder %s159, %s160
      %p172 = scmp.eq.s32.totalorder %s24, 1
      %p173 = por %p171, %p172
      %p175 = scmp.ne.s32.totalorder %s160, %s174
      %p176 = scmp.eq.s32.totalorder %s24, 0
      %p177 = por %p175, %p176
      %s178 = ssub.s32 %s18, %s25
      %p179 = scmp.eq.s32.totalorder %s178, 0
      %s181 = sadd.s32 %s180, 1
      %s182 = scalar_select %p179, %s180, %s181
      %p185 = pneg %p179
      %p186 = scmp.eq.s32.totalorder %s18, 1
      %p187 = por %p185, %p186
      %p188 = scmp.ne.s32.totalorder %s180, %s183
      %p189 = scmp.eq.s32.totalorder %s18, 0
      %p190 = por %p188, %p189
      %p191 = scmp.ne.s32.totalorder %s180, %s183
      %p192 = scmp.eq.s32.totalorder %s23, 1
      %p193 = por %p191, %p192
      %p194 = scmp.ne.s32.totalorder %s183, %s184
      %p195 = scmp.eq.s32.totalorder %s23, 0
      %p196 = por %p194, %p195
      %p197 = scmp.ne.s32.totalorder %s183, %s184
      %p198 = scmp.eq.s32.totalorder %s24, 1
      %p199 = por %p197, %p198
      %p201 = scmp.ne.s32.totalorder %s184, %s200
      %p202 = scmp.eq.s32.totalorder %s24, 0
      %p203 = por %p201, %p202
      %p204 = scmp.le.s32.totalorder 1, %s18
      %p205 = scmp.lt.s32.totalorder %s18, 3
      %p206 = pnand %p204, %p205
      %p207 = pneg %p206
      // Predicated region
      $region9: #{tpu_custom_call.1} parent=5 // pred_check
        _
      $region10: #{tpu_custom_call.1} parent=5 // pred_check_branch
        %209 = sbr.rel (%p206) target = $region12
      $region11: #{tpu_custom_call.1} parent=5 // pred_region
        %s210 = ssub.s32 %s18, 1
        // Predicated region
        $region13: #{tpu_custom_call.1} parent=11 // pred_check
          %p211 = pneg %p65
        $region14: #{tpu_custom_call.1} parent=11 // pred_check_branch
          %213 = sbr.rel (%p211) target = $region16
        $region15: #{tpu_custom_call.1} parent=11 // pred_region
          _
        $region16: #{tpu_custom_call.1} parent=11 // pred_fallthru
          _
        // Predicated region
        $region17: #{tpu_custom_call.1} parent=11 // pred_check
          %p214 = pneg %p86
        $region18: #{tpu_custom_call.1} parent=11 // pred_check_branch
          %216 = sbr.rel (%p214) target = $region20
        $region19: #{tpu_custom_call.1} parent=11 // pred_region
          _
        $region20: #{tpu_custom_call.1} parent=11 // pred_fallthru
          _
        // Predicated region
        $region21: #{tpu_custom_call.1} parent=11 // pred_check
          %p217 = pneg %p107
        $region22: #{tpu_custom_call.1} parent=11 // pred_check_branch
          %219 = sbr.rel (%p217) target = $region24
        $region23: #{tpu_custom_call.1} parent=11 // pred_region
          _
        $region24: #{tpu_custom_call.1} parent=11 // pred_fallthru
          _
        // Predicated region
        $region25: #{tpu_custom_call.1} parent=11 // pred_check
          %p220 = pneg %p128
        $region26: #{tpu_custom_call.1} parent=11 // pred_check_branch
          %222 = sbr.rel (%p220) target = $region28
        $region27: #{tpu_custom_call.1} parent=11 // pred_region
          _
        $region28: #{tpu_custom_call.1} parent=11 // pred_fallthru
          _
        // Predicated region
        $region29: #{tpu_custom_call.1} parent=11 // pred_check
          %p223 = pneg %p149
        $region30: #{tpu_custom_call.1} parent=11 // pred_check_branch
          %225 = sbr.rel (%p223) target = $region32
        $region31: #{tpu_custom_call.1} parent=11 // pred_region
          _
        $region32: #{tpu_custom_call.1} parent=11 // pred_fallthru
          _
        // Predicated region
        $region33: #{tpu_custom_call.1} parent=11 // pred_check
          %p226 = pneg %p170
        $region34: #{tpu_custom_call.1} parent=11 // pred_check_branch
          %228 = sbr.rel (%p226) target = $region36
        $region35: #{tpu_custom_call.1} parent=11 // pred_region
          _
        $region36: #{tpu_custom_call.1} parent=11 // pred_fallthru
          _
      $region12: #{tpu_custom_call.1} parent=5 // pred_fallthru
        _
      %p229 = scmp.lt.s32.totalorder %s18, 2
      // Predicated region
      $region37: #{tpu_custom_call.1} parent=5 // pred_check
        %p230 = pneg %p229
      $region38: #{tpu_custom_call.1} parent=5 // pred_check_branch
        %232 = sbr.rel (%p230) target = $region40
      $region39: #{tpu_custom_call.1} parent=5 // pred_region
        // Predicated region
        $region41: #{tpu_custom_call.1} parent=39 // pred_check
          %p233 = pneg %p38
        $region42: #{tpu_custom_call.1} parent=39 // pred_check_branch
          %235 = sbr.rel (%p233) target = $region44
        $region43: #{tpu_custom_call.1} parent=39 // pred_region
          %s236 = smul.u32 32, %s18
          %s237 = ssub.s32 38, %s236
          %p238 = scmp.lt.s32.totalorder %s237, 32
          %s239 = scalar_select %p238, %s237, 32
          %s240 = smul.u32 128, %s239
          %p241 = scmp.lt.s32.totalorder %s236, 37
          %s242 = scalar_select %p241, %s236, 37
          %s243 = smul.addr %s242, 8
          %s244 = scalar_lea.vmem %s0, %s243
          %s245 = smul.u32 32, %s18
          %s246 = ssub.s32 38, %s245
          %p247 = scmp.lt.s32.totalorder %s246, 32
          %s248 = scalar_select %p247, %s246, 32
          %s249 = smul.u32 128, %s248
        $region44: #{tpu_custom_call.1} parent=39 // pred_fallthru
          _
      $region40: #{tpu_custom_call.1} parent=5 // pred_fallthru
        _
      %p250 = scmp.le.s32.totalorder 1, %s18
      %p251 = scmp.lt.s32.totalorder %s18, 3
      %p252 = pnand %p250, %p251
      %p253 = pneg %p252
      // Predicated region
      $region45: #{tpu_custom_call.1} parent=5 // pred_check
        _
      $region46: #{tpu_custom_call.1} parent=5 // pred_check_branch
        %255 = sbr.rel (%p252) target = $region48
      $region47: #{tpu_custom_call.1} parent=5 // pred_region
        %s256 = ssub.s32 %s18, 1
        %s257 = smul.u32 32, %s23
        %s258 = ssub.s32 38, %s257
        %p259 = scmp.lt.s32.totalorder %s258, 32
        %s260 = scalar_select %p259, %s258, 32
        %s261 = smul.u32 128, %s260
        %p262 = scmp.lt.s32.totalorder %s257, 37
        %s263 = scalar_select %p262, %s257, 37
        %s264 = smul.addr %s263, 8
        %s265 = scalar_lea.vmem %s0, %s264
        %p266 = pneg %p44
        %p267 = pneg %p41
        %p268 = pneg %p65
        %p269 = pneg %p62
        %p270 = pneg %p86
        %p271 = pneg %p83
        %p272 = pneg %p107
        %p273 = pneg %p104
        %p274 = pneg %p128
        %p275 = pneg %p125
        %p276 = pneg %p149
        %p277 = pneg %p146
        %p278 = pneg %p170
        %p279 = pneg %p167
        %p280 = pneg %p196
        %p281 = pneg %p193
        %s282 = sand.u32 %s183, 1
        %s283 = scalar_lea.sflag [#allocation4], %s282
        %s284 = sand.u32 %s183, 1
        %s285 = smul.addr %s284, 2
        %s286 = scalar_lea.vmem [#allocation3], %s285
        %s287 = smul.u32 32, %s23
        %s288 = ssub.s32 38, %s287
        %p289 = scmp.lt.s32.totalorder %s288, 32
        %s290 = scalar_select %p289, %s288, 32
        %s291 = smul.u32 128, %s290
        %p292 = scmp.lt.s32.totalorder %s287, 37
        %s293 = scalar_select %p292, %s287, 37
        %s294 = smul.addr %s293, 8
        %s295 = scalar_lea.vmem %s0, %s294
        %s296 = smul.u32 32, %s23
        %s297 = ssub.s32 38, %s296
        %p298 = scmp.lt.s32.totalorder %s297, 32
        %s299 = scalar_select %p298, %s297, 32
        %s300 = smul.u32 128, %s299
        %v302 = vld [vmem:[%s295] sm:$0xff]
        %v303 = vld [vmem:[%s295 + $0x8] sm:$0xff]
        %v304 = vld [vmem:[%s295 + $0x10] sm:$0xff]
        %v305 = vld [vmem:[%s295 + $0x18] sm:$0xff]
        %v306 = vld [vmem:[%s295 + $0x20] sm:$0xff]
        %v307 = vld [vmem:[%s295 + $0x28] sm:$0xff]
        %v308 = vld [vmem:[%s295 + $0x30] sm:$0xff]
        %v309 = vld [vmem:[%s295 + $0x38] sm:$0xff]
        %v310 = vld [vmem:[%s295 + $0x40] sm:$0xff]
        %v311 = vld [vmem:[%s295 + $0x48] sm:$0xff]
        %v312 = vld [vmem:[%s295 + $0x50] sm:$0xff]
        %v313 = vld [vmem:[%s295 + $0x58] sm:$0xff]
        %v314 = vld [vmem:[%s295 + $0x60] sm:$0xff]
        %v315 = vld [vmem:[%s295 + $0x68] sm:$0xff]
        %v316 = vld [vmem:[%s295 + $0x70] sm:$0xff]
        %v317 = vld [vmem:[%s295 + $0x78] sm:$0xff]
        %v318 = vld [vmem:[%s295 + $0x80] sm:$0xff]
        %v319 = vld [vmem:[%s295 + $0x88] sm:$0xff]
        %v320 = vld [vmem:[%s295 + $0x90] sm:$0xff]
        %v321 = vld [vmem:[%s295 + $0x98] sm:$0xff]
        %v322 = vld [vmem:[%s295 + $0xa0] sm:$0xff]
        %v323 = vld [vmem:[%s295 + $0xa8] sm:$0xff]
        %v324 = vld [vmem:[%s295 + $0xb0] sm:$0xff]
        %v325 = vld [vmem:[%s295 + $0xb8] sm:$0xff]
        %v326 = vld [vmem:[%s295 + $0xc0] sm:$0xff]
        %v327 = vld [vmem:[%s295 + $0xc8] sm:$0xff]
        %v328 = vld [vmem:[%s295 + $0xd0] sm:$0xff]
        %v329 = vld [vmem:[%s295 + $0xd8] sm:$0xff]
        %v330 = vld [vmem:[%s295 + $0xe0] sm:$0xff]
        %v331 = vld [vmem:[%s295 + $0xe8] sm:$0xff]
        %v332 = vld [vmem:[%s295 + $0xf0] sm:$0xff]
        %v333 = vld [vmem:[%s295 + $0xf8] sm:$0xff]
        %v334 = vpack.c.bf16 %v303, %v302
        %v335 = vpack.c.bf16 %v305, %v304
        %v336 = vpack.c.bf16 %v307, %v306
        %v337 = vpack.c.bf16 %v309, %v308
        %v338 = vpack.c.bf16 %v311, %v310
        %v339 = vpack.c.bf16 %v313, %v312
        %v340 = vpack.c.bf16 %v315, %v314
        %v341 = vpack.c.bf16 %v317, %v316
        %v342 = vpack.c.bf16 %v319, %v318
        %v343 = vpack.c.bf16 %v321, %v320
        %v344 = vpack.c.bf16 %v323, %v322
        %v345 = vpack.c.bf16 %v325, %v324
        %v346 = vpack.c.bf16 %v327, %v326
        %v347 = vpack.c.bf16 %v329, %v328
        %v348 = vpack.c.bf16 %v331, %v330
        %v349 = vpack.c.bf16 %v333, %v332
        %v350 = vld [vmem:[%s1] sm:$0xf]
        %v351 = vld [vmem:[%s1 + $0x4] sm:$0xf]
        %v352 = vld [vmem:[%s1 + $0x8] sm:$0xf]
        %v353 = vld [vmem:[%s1 + $0xc] sm:$0xf]
        %v354 = vld [vmem:[%s2] sm:$0x1]
        %v356 = vlaneseq
        %v357 = vshrl.u32 %v356, 7
        %v358 = vsub.s32 0, %v357
        %v359 = vrot.slane %v354, %v358
        %v365 = vunpack.c.l.b16 %v350
        %v366 = vunpack.c.l.b16 %v351
        %v367 = vunpack.c.l.b16 %v352
        %v368 = vunpack.c.l.b16 %v353
        %v369 = vpack.c.b16 %v366, %v365
        %v370 = vpack.c.b16 %v368, %v367
        %vm373 = vcmask 261120
        %v375 = vsel %vm373, %v334, 0
        %v378 = vsel %vm373, %v335, 0
        %v381 = vsel %vm373, %v336, 0
        %v384 = vsel %vm373, %v337, 0
        %v387 = vsel %vm373, %v338, 0
        %v390 = vsel %vm373, %v339, 0
        %v393 = vsel %vm373, %v340, 0
        %v396 = vsel %vm373, %v341, 0
        %v399 = vsel %vm373, %v342, 0
        %v402 = vsel %vm373, %v343, 0
        %v405 = vsel %vm373, %v344, 0
        %v408 = vsel %vm373, %v345, 0
        %v411 = vsel %vm373, %v346, 0
        %v414 = vsel %vm373, %v347, 0
        %v417 = vsel %vm373, %v348, 0
        %v420 = vsel %vm373, %v349, 0
        %422 = vmatprep.subr.bf16.mxu0 0
        %423 = vmatpush1.bf16.msra.mxu0 %v369
        %424 = vmatprep.subr.bf16.mxu0 0
        %425 = vmatpush1.bf16.msra.mxu0 %v370
        %426 = vmatprep.subr.bf16.mxu0 0
        %427 = vmatpush1.bf16.msra.mxu0 0
        %428 = vmatprep.subr.bf16.mxu0 0
        %429 = vmatpush1.bf16.msra.mxu0 0
        %430 = vmatprep.subr.bf16.mxu0 0
        %431 = vmatpush1.bf16.msra.mxu0 0
        %432 = vmatprep.subr.bf16.mxu0 0
        %433 = vmatpush1.bf16.msra.mxu0 0
        %434 = vmatprep.subr.bf16.mxu0 0
        %435 = vmatpush1.bf16.msra.mxu0 0
        %436 = vmatprep.subr.bf16.mxu0 0
        %437 = vmatpush1.bf16.msra.mxu0 0
        %438 = vmatprep.subr.bf16.mxu0 0
        %439 = vmatpush1.bf16.msra.mxu0 0
        %440 = vmatprep.subr.bf16.mxu0 0
        %441 = vmatpush1.bf16.msra.mxu0 0
        %442 = vmatprep.subr.bf16.mxu0 0
        %443 = vmatpush1.bf16.msra.mxu0 0
        %444 = vmatprep.subr.bf16.mxu0 0
        %445 = vmatpush1.bf16.msra.mxu0 0
        %446 = vmatprep.subr.bf16.mxu0 0
        %447 = vmatpush1.bf16.msra.mxu0 0
        %448 = vmatprep.subr.bf16.mxu0 0
        %449 = vmatpush1.bf16.msra.mxu0 0
        %450 = vmatprep.subr.bf16.mxu0 0
        %451 = vmatpush1.bf16.msra.mxu0 0
        %452 = vmatprep.subr.bf16.mxu0 0
        %453 = vmatpush1.bf16.msra.mxu0 0
        %454 = vmatprep.mubr.bf16.mxu0 0
        %455 = vmatmul.mubr.bf16.gmra.mrb[0].mxu0 %v375
        %v456 = vpop.f32.mrb[0].mxu0
        %v457 = vadd.f32 %v359, %v456
        %v458 = vpop.f32.mrb[0].mxu0
        %v459 = vpop.f32.mrb[0].mxu0
        %v460 = vadd.f32 %v359, %v459
        %v461 = vpop.f32.mrb[0].mxu0
        %462 = vmatprep.mubr.bf16.mxu0 0
        %463 = vmatmul.mubr.bf16.gmra.mrb[0].mxu0 %v378
        %v464 = vpop.f32.mrb[0].mxu0
        %v465 = vadd.f32 %v359, %v464
        %v466 = vpop.f32.mrb[0].mxu0
        %v467 = vpop.f32.mrb[0].mxu0
        %v468 = vadd.f32 %v359, %v467
        %v469 = vpop.f32.mrb[0].mxu0
        %470 = vmatprep.mubr.bf16.mxu0 0
        %471 = vmatmul.mubr.bf16.gmra.mrb[0].mxu0 %v381
        %v472 = vpop.f32.mrb[0].mxu0
        %v473 = vadd.f32 %v359, %v472
        %v474 = vpop.f32.mrb[0].mxu0
        %v475 = vpop.f32.mrb[0].mxu0
        %v476 = vadd.f32 %v359, %v475
        %v477 = vpop.f32.mrb[0].mxu0
        %478 = vmatprep.mubr.bf16.mxu0 0
        %479 = vmatmul.mubr.bf16.gmra.mrb[0].mxu0 %v384
        %v480 = vpop.f32.mrb[0].mxu0
        %v481 = vadd.f32 %v359, %v480
        %v482 = vpop.f32.mrb[0].mxu0
        %v483 = vpop.f32.mrb[0].mxu0
        %v484 = vadd.f32 %v359, %v483
        %v485 = vpop.f32.mrb[0].mxu0
        %486 = vmatprep.mubr.bf16.mxu0 0
        %487 = vmatmul.mubr.bf16.gmra.mrb[0].mxu0 %v387
        %v488 = vpop.f32.mrb[0].mxu0
        %v489 = vadd.f32 %v359, %v488
        %v490 = vpop.f32.mrb[0].mxu0
        %v491 = vpop.f32.mrb[0].mxu0
        %v492 = vadd.f32 %v359, %v491
        %v493 = vpop.f32.mrb[0].mxu0
        %494 = vmatprep.mubr.bf16.mxu0 0
        %495 = vmatmul.mubr.bf16.gmra.mrb[0].mxu0 %v390
        %v496 = vpop.f32.mrb[0].mxu0
        %v497 = vadd.f32 %v359, %v496
        %v498 = vpop.f32.mrb[0].mxu0
        %v499 = vpop.f32.mrb[0].mxu0
        %v500 = vadd.f32 %v359, %v499
        %v501 = vpop.f32.mrb[0].mxu0
        %502 = vmatprep.mubr.bf16.mxu0 0
        %503 = vmatmul.mubr.bf16.gmra.mrb[0].mxu0 %v393
        %v504 = vpop.f32.mrb[0].mxu0
        %v505 = vadd.f32 %v359, %v504
        %v506 = vpop.f32.mrb[0].mxu0
        %v507 = vpop.f32.mrb[0].mxu0
        %v508 = vadd.f32 %v359, %v507
        %v509 = vpop.f32.mrb[0].mxu0
        %510 = vmatprep.mubr.bf16.mxu0 0
        %511 = vmatmul.mubr.bf16.gmra.mrb[0].mxu0 %v396
        %v512 = vpop.f32.mrb[0].mxu0
        %v513 = vadd.f32 %v359, %v512
        %v514 = vpop.f32.mrb[0].mxu0
        %v515 = vpop.f32.mrb[0].mxu0
        %v516 = vadd.f32 %v359, %v515
        %v517 = vpop.f32.mrb[0].mxu0
        %518 = vmatprep.mubr.bf16.mxu0 0
        %519 = vmatmul.mubr.bf16.gmra.mrb[0].mxu0 %v399
        %v520 = vpop.f32.mrb[0].mxu0
        %v521 = vadd.f32 %v359, %v520
        %v522 = vpop.f32.mrb[0].mxu0
        %v523 = vpop.f32.mrb[0].mxu0
        %v524 = vadd.f32 %v359, %v523
        %v525 = vpop.f32.mrb[0].mxu0
        %526 = vmatprep.mubr.bf16.mxu0 0
        %527 = vmatmul.mubr.bf16.gmra.mrb[0].mxu0 %v402
        %v528 = vpop.f32.mrb[0].mxu0
        %v529 = vadd.f32 %v359, %v528
        %v530 = vpop.f32.mrb[0].mxu0
        %v531 = vpop.f32.mrb[0].mxu0
        %v532 = vadd.f32 %v359, %v531
        %v533 = vpop.f32.mrb[0].mxu0
        %534 = vmatprep.mubr.bf16.mxu0 0
        %535 = vmatmul.mubr.bf16.gmra.mrb[0].mxu0 %v405
        %v536 = vpop.f32.mrb[0].mxu0
        %v537 = vadd.f32 %v359, %v536
        %v538 = vpop.f32.mrb[0].mxu0
        %v539 = vpop.f32.mrb[0].mxu0
        %v540 = vadd.f32 %v359, %v539
        %v541 = vpop.f32.mrb[0].mxu0
        %542 = vmatprep.mubr.bf16.mxu0 0
        %543 = vmatmul.mubr.bf16.gmra.mrb[0].mxu0 %v408
        %v544 = vpop.f32.mrb[0].mxu0
        %v545 = vadd.f32 %v359, %v544
        %v546 = vpop.f32.mrb[0].mxu0
        %v547 = vpop.f32.mrb[0].mxu0
        %v548 = vadd.f32 %v359, %v547
        %v549 = vpop.f32.mrb[0].mxu0
        %550 = vmatprep.mubr.bf16.mxu0 0
        %551 = vmatmul.mubr.bf16.gmra.mrb[0].mxu0 %v411
        %v552 = vpop.f32.mrb[0].mxu0
        %v553 = vadd.f32 %v359, %v552
        %v554 = vpop.f32.mrb[0].mxu0
        %v555 = vpop.f32.mrb[0].mxu0
        %v556 = vadd.f32 %v359, %v555
        %v557 = vpop.f32.mrb[0].mxu0
        %558 = vmatprep.mubr.bf16.mxu0 0
        %559 = vmatmul.mubr.bf16.gmra.mrb[0].mxu0 %v414
        %v560 = vpop.f32.mrb[0].mxu0
        %v561 = vadd.f32 %v359, %v560
        %v562 = vpop.f32.mrb[0].mxu0
        %v563 = vpop.f32.mrb[0].mxu0
        %v564 = vadd.f32 %v359, %v563
        %v565 = vpop.f32.mrb[0].mxu0
        %566 = vmatprep.mubr.bf16.mxu0 0
        %567 = vmatmul.mubr.bf16.gmra.mrb[0].mxu0 %v417
        %v568 = vpop.f32.mrb[0].mxu0
        %v569 = vadd.f32 %v359, %v568
        %v570 = vpop.f32.mrb[0].mxu0
        %v571 = vpop.f32.mrb[0].mxu0
        %v572 = vadd.f32 %v359, %v571
        %v573 = vpop.f32.mrb[0].mxu0
        %574 = vmatprep.mubr.bf16.mxu0 0
        %575 = vmatmul.mubr.bf16.gmra.mrb[0].mxu0 %v420
        %v576 = vpop.f32.mrb[0].mxu0
        %v577 = vadd.f32 %v359, %v576
        %v578 = vpop.f32.mrb[0].mxu0
        %v579 = vpop.f32.mrb[0].mxu0
        %v580 = vadd.f32 %v359, %v579
        %v581 = vpop.f32.mrb[0].mxu0
        %582 = vdwg.mxu0
        %v583 = vmax.f32 %v457, 0.0
        %v584 = vmax.f32 %v460, 0.0
        %v585 = vmax.f32 %v465, 0.0
        %v586 = vmax.f32 %v468, 0.0
        %v587 = vmax.f32 %v473, 0.0
        %v588 = vmax.f32 %v476, 0.0
        %v589 = vmax.f32 %v481, 0.0
        %v590 = vmax.f32 %v484, 0.0
        %v591 = vmax.f32 %v489, 0.0
        %v592 = vmax.f32 %v492, 0.0
        %v593 = vmax.f32 %v497, 0.0
        %v594 = vmax.f32 %v500, 0.0
        %v595 = vmax.f32 %v505, 0.0
        %v596 = vmax.f32 %v508, 0.0
        %v597 = vmax.f32 %v513, 0.0
        %v598 = vmax.f32 %v516, 0.0
        %v599 = vmax.f32 %v521, 0.0
        %v600 = vmax.f32 %v524, 0.0
        %v601 = vmax.f32 %v529, 0.0
        %v602 = vmax.f32 %v532, 0.0
        %v603 = vmax.f32 %v537, 0.0
        %v604 = vmax.f32 %v540, 0.0
        %v605 = vmax.f32 %v545, 0.0
        %v606 = vmax.f32 %v548, 0.0
        %v607 = vmax.f32 %v553, 0.0
        %v608 = vmax.f32 %v556, 0.0
        %v609 = vmax.f32 %v561, 0.0
        %v610 = vmax.f32 %v564, 0.0
        %v611 = vmax.f32 %v569, 0.0
        %v612 = vmax.f32 %v572, 0.0
        %v613 = vmax.f32 %v577, 0.0
        %v614 = vmax.f32 %v580, 0.0
        %v615 = vpack.c.bf16 %v584, %v583
        %v616 = vpack.c.bf16 %v586, %v585
        %v617 = vpack.c.bf16 %v588, %v587
        %v618 = vpack.c.bf16 %v590, %v589
        %v619 = vpack.c.bf16 %v592, %v591
        %v620 = vpack.c.bf16 %v594, %v593
        %v621 = vpack.c.bf16 %v596, %v595
        %v622 = vpack.c.bf16 %v598, %v597
        %v623 = vpack.c.bf16 %v600, %v599
        %v624 = vpack.c.bf16 %v602, %v601
        %v625 = vpack.c.bf16 %v604, %v603
        %v626 = vpack.c.bf16 %v606, %v605
        %v627 = vpack.c.bf16 %v608, %v607
        %v628 = vpack.c.bf16 %v610, %v609
        %v629 = vpack.c.bf16 %v612, %v611
        %v630 = vpack.c.bf16 %v614, %v613
        %v631 = vld [vmem:[%s3] sm:$0xf]
        %v632 = vld [vmem:[%s3 + $0x4] sm:$0xf]
        %v633 = vld [vmem:[%s3 + $0x8] sm:$0xf]
        %v634 = vld [vmem:[%s3 + $0xc] sm:$0xf]
        %v635 = vld [vmem:[%s3 + $0x10] sm:$0xf]
        %v636 = vld [vmem:[%s3 + $0x14] sm:$0xf]
        %v637 = vld [vmem:[%s3 + $0x18] sm:$0xf]
        %v638 = vld [vmem:[%s3 + $0x1c] sm:$0xf]
        %v639 = vld [vmem:[%s4] sm:$0x1]
        %v641 = vlaneseq
        %v642 = vshrl.u32 %v641, 7
        %v643 = vsub.s32 0, %v642
        %v644 = vrot.slane %v639, %v643
        %v654 = vunpack.c.l.b16 %v631
        %v655 = vunpack.c.l.b16 %v632
        %v656 = vunpack.c.l.b16 %v633
        %v657 = vunpack.c.l.b16 %v634
        %v658 = vunpack.c.l.b16 %v635
        %v659 = vunpack.c.l.b16 %v636
        %v660 = vunpack.c.l.b16 %v637
        %v661 = vunpack.c.l.b16 %v638
        %v662 = vpack.c.b16 %v655, %v654
        %v663 = vpack.c.b16 %v657, %v656
        %v664 = vpack.c.b16 %v659, %v658
        %v665 = vpack.c.b16 %v661, %v660
        %vm670 = vcmask 523264
        %v672 = vsel %vm670, %v615, 0
        %v675 = vsel %vm670, %v616, 0
        %v678 = vsel %vm670, %v617, 0
        %v681 = vsel %vm670, %v618, 0
        %v684 = vsel %vm670, %v619, 0
        %v687 = vsel %vm670, %v620, 0
        %v690 = vsel %vm670, %v621, 0
        %v693 = vsel %vm670, %v622, 0
        %v696 = vsel %vm670, %v623, 0
        %v699 = vsel %vm670, %v624, 0
        %v702 = vsel %vm670, %v625, 0
        %v705 = vsel %vm670, %v626, 0
        %v708 = vsel %vm670, %v627, 0
        %v711 = vsel %vm670, %v628, 0
        %v714 = vsel %vm670, %v629, 0
        %v717 = vsel %vm670, %v630, 0
        %719 = vmatprep.subr.bf16.mxu0 0
        %720 = vmatpush1.bf16.msra.mxu0 %v662
        %721 = vmatprep.subr.bf16.mxu0 0
        %722 = vmatpush1.bf16.msra.mxu0 %v663
        %723 = vmatprep.subr.bf16.mxu0 0
        %724 = vmatpush1.bf16.msra.mxu0 %v664
        %725 = vmatprep.subr.bf16.mxu0 0
        %726 = vmatpush1.bf16.msra.mxu0 %v665
        %727 = vmatprep.subr.bf16.mxu0 0
        %728 = vmatpush1.bf16.msra.mxu0 0
        %729 = vmatprep.subr.bf16.mxu0 0
        %730 = vmatpush1.bf16.msra.mxu0 0
        %731 = vmatprep.subr.bf16.mxu0 0
        %732 = vmatpush1.bf16.msra.mxu0 0
        %733 = vmatprep.subr.bf16.mxu0 0
        %734 = vmatpush1.bf16.msra.mxu0 0
        %735 = vmatprep.subr.bf16.mxu0 0
        %736 = vmatpush1.bf16.msra.mxu0 0
        %737 = vmatprep.subr.bf16.mxu0 0
        %738 = vmatpush1.bf16.msra.mxu0 0
        %739 = vmatprep.subr.bf16.mxu0 0
        %740 = vmatpush1.bf16.msra.mxu0 0
        %741 = vmatprep.subr.bf16.mxu0 0
        %742 = vmatpush1.bf16.msra.mxu0 0
        %743 = vmatprep.subr.bf16.mxu0 0
        %744 = vmatpush1.bf16.msra.mxu0 0
        %745 = vmatprep.subr.bf16.mxu0 0
        %746 = vmatpush1.bf16.msra.mxu0 0
        %747 = vmatprep.subr.bf16.mxu0 0
        %748 = vmatpush1.bf16.msra.mxu0 0
        %749 = vmatprep.subr.bf16.mxu0 0
        %750 = vmatpush1.bf16.msra.mxu0 0
        %751 = vmatprep.mubr.bf16.mxu0 0
        %752 = vmatmul.mubr.bf16.gmra.mrb[0].mxu0 %v672
        %v753 = vpop.f32.mrb[0].mxu0
        %v754 = vadd.f32 %v644, %v753
        %v755 = vpop.f32.mrb[0].mxu0
        %v756 = vpop.f32.mrb[0].mxu0
        %v757 = vadd.f32 %v644, %v756
        %v758 = vpop.f32.mrb[0].mxu0
        %759 = vmatprep.mubr.bf16.mxu0 0
        %760 = vmatmul.mubr.bf16.gmra.mrb[0].mxu0 %v675
        %v761 = vpop.f32.mrb[0].mxu0
        %v762 = vadd.f32 %v644, %v761
        %v763 = vpop.f32.mrb[0].mxu0
        %v764 = vpop.f32.mrb[0].mxu0
        %v765 = vadd.f32 %v644, %v764
        %v766 = vpop.f32.mrb[0].mxu0
        %767 = vmatprep.mubr.bf16.mxu0 0
        %768 = vmatmul.mubr.bf16.gmra.mrb[0].mxu0 %v678
        %v769 = vpop.f32.mrb[0].mxu0
        %v770 = vadd.f32 %v644, %v769
        %v771 = vpop.f32.mrb[0].mxu0
        %v772 = vpop.f32.mrb[0].mxu0
        %v773 = vadd.f32 %v644, %v772
        %v774 = vpop.f32.mrb[0].mxu0
        %775 = vmatprep.mubr.bf16.mxu0 0
        %776 = vmatmul.mubr.bf16.gmra.mrb[0].mxu0 %v681
        %v777 = vpop.f32.mrb[0].mxu0
        %v778 = vadd.f32 %v644, %v777
        %v779 = vpop.f32.mrb[0].mxu0
        %v780 = vpop.f32.mrb[0].mxu0
        %v781 = vadd.f32 %v644, %v780
        %v782 = vpop.f32.mrb[0].mxu0
        %783 = vmatprep.mubr.bf16.mxu0 0
        %784 = vmatmul.mubr.bf16.gmra.mrb[0].mxu0 %v684
        %v785 = vpop.f32.mrb[0].mxu0
        %v786 = vadd.f32 %v644, %v785
        %v787 = vpop.f32.mrb[0].mxu0
        %v788 = vpop.f32.mrb[0].mxu0
        %v789 = vadd.f32 %v644, %v788
        %v790 = vpop.f32.mrb[0].mxu0
        %791 = vmatprep.mubr.bf16.mxu0 0
        %792 = vmatmul.mubr.bf16.gmra.mrb[0].mxu0 %v687
        %v793 = vpop.f32.mrb[0].mxu0
        %v794 = vadd.f32 %v644, %v793
        %v795 = vpop.f32.mrb[0].mxu0
        %v796 = vpop.f32.mrb[0].mxu0
        %v797 = vadd.f32 %v644, %v796
        %v798 = vpop.f32.mrb[0].mxu0
        %799 = vmatprep.mubr.bf16.mxu0 0
        %800 = vmatmul.mubr.bf16.gmra.mrb[0].mxu0 %v690
        %v801 = vpop.f32.mrb[0].mxu0
        %v802 = vadd.f32 %v644, %v801
        %v803 = vpop.f32.mrb[0].mxu0
        %v804 = vpop.f32.mrb[0].mxu0
        %v805 = vadd.f32 %v644, %v804
        %v806 = vpop.f32.mrb[0].mxu0
        %807 = vmatprep.mubr.bf16.mxu0 0
        %808 = vmatmul.mubr.bf16.gmra.mrb[0].mxu0 %v693
        %v809 = vpop.f32.mrb[0].mxu0
        %v810 = vadd.f32 %v644, %v809
        %v811 = vpop.f32.mrb[0].mxu0
        %v812 = vpop.f32.mrb[0].mxu0
        %v813 = vadd.f32 %v644, %v812
        %v814 = vpop.f32.mrb[0].mxu0
        %815 = vmatprep.mubr.bf16.mxu0 0
        %816 = vmatmul.mubr.bf16.gmra.mrb[0].mxu0 %v696
        %v817 = vpop.f32.mrb[0].mxu0
        %v818 = vadd.f32 %v644, %v817
        %v819 = vpop.f32.mrb[0].mxu0
        %v820 = vpop.f32.mrb[0].mxu0
        %v821 = vadd.f32 %v644, %v820
        %v822 = vpop.f32.mrb[0].mxu0
        %823 = vmatprep.mubr.bf16.mxu0 0
        %824 = vmatmul.mubr.bf16.gmra.mrb[0].mxu0 %v699
        %v825 = vpop.f32.mrb[0].mxu0
        %v826 = vadd.f32 %v644, %v825
        %v827 = vpop.f32.mrb[0].mxu0
        %v828 = vpop.f32.mrb[0].mxu0
        %v829 = vadd.f32 %v644, %v828
        %v830 = vpop.f32.mrb[0].mxu0
        %831 = vmatprep.mubr.bf16.mxu0 0
        %832 = vmatmul.mubr.bf16.gmra.mrb[0].mxu0 %v702
        %v833 = vpop.f32.mrb[0].mxu0
        %v834 = vadd.f32 %v644, %v833
        %v835 = vpop.f32.mrb[0].mxu0
        %v836 = vpop.f32.mrb[0].mxu0
        %v837 = vadd.f32 %v644, %v836
        %v838 = vpop.f32.mrb[0].mxu0
        %839 = vmatprep.mubr.bf16.mxu0 0
        %840 = vmatmul.mubr.bf16.gmra.mrb[0].mxu0 %v705
        %v841 = vpop.f32.mrb[0].mxu0
        %v842 = vadd.f32 %v644, %v841
        %v843 = vpop.f32.mrb[0].mxu0
        %v844 = vpop.f32.mrb[0].mxu0
        %v845 = vadd.f32 %v644, %v844
        %v846 = vpop.f32.mrb[0].mxu0
        %847 = vmatprep.mubr.bf16.mxu0 0
        %848 = vmatmul.mubr.bf16.gmra.mrb[0].mxu0 %v708
        %v849 = vpop.f32.mrb[0].mxu0
        %v850 = vadd.f32 %v644, %v849
        %v851 = vpop.f32.mrb[0].mxu0
        %v852 = vpop.f32.mrb[0].mxu0
        %v853 = vadd.f32 %v644, %v852
        %v854 = vpop.f32.mrb[0].mxu0
        %855 = vmatprep.mubr.bf16.mxu0 0
        %856 = vmatmul.mubr.bf16.gmra.mrb[0].mxu0 %v711
        %v857 = vpop.f32.mrb[0].mxu0
        %v858 = vadd.f32 %v644, %v857
        %v859 = vpop.f32.mrb[0].mxu0
        %v860 = vpop.f32.mrb[0].mxu0
        %v861 = vadd.f32 %v644, %v860
        %v862 = vpop.f32.mrb[0].mxu0
        %863 = vmatprep.mubr.bf16.mxu0 0
        %864 = vmatmul.mubr.bf16.gmra.mrb[0].mxu0 %v714
        %v865 = vpop.f32.mrb[0].mxu0
        %v866 = vadd.f32 %v644, %v865
        %v867 = vpop.f32.mrb[0].mxu0
        %v868 = vpop.f32.mrb[0].mxu0
        %v869 = vadd.f32 %v644, %v868
        %v870 = vpop.f32.mrb[0].mxu0
        %871 = vmatprep.mubr.bf16.mxu0 0
        %872 = vmatmul.mubr.bf16.gmra.mrb[0].mxu0 %v717
        %v873 = vpop.f32.mrb[0].mxu0
        %v874 = vadd.f32 %v644, %v873
        %v875 = vpop.f32.mrb[0].mxu0
        %v876 = vpop.f32.mrb[0].mxu0
        %v877 = vadd.f32 %v644, %v876
        %v878 = vpop.f32.mrb[0].mxu0
        %879 = vdwg.mxu0
        %v880 = vmax.f32 %v754, 0.0
        %v881 = vmax.f32 %v757, 0.0
        %v882 = vmax.f32 %v762, 0.0
        %v883 = vmax.f32 %v765, 0.0
        %v884 = vmax.f32 %v770, 0.0
        %v885 = vmax.f32 %v773, 0.0
        %v886 = vmax.f32 %v778, 0.0
        %v887 = vmax.f32 %v781, 0.0
        %v888 = vmax.f32 %v786, 0.0
        %v889 = vmax.f32 %v789, 0.0
        %v890 = vmax.f32 %v794, 0.0
        %v891 = vmax.f32 %v797, 0.0
        %v892 = vmax.f32 %v802, 0.0
        %v893 = vmax.f32 %v805, 0.0
        %v894 = vmax.f32 %v810, 0.0
        %v895 = vmax.f32 %v813, 0.0
        %v896 = vmax.f32 %v818, 0.0
        %v897 = vmax.f32 %v821, 0.0
        %v898 = vmax.f32 %v826, 0.0
        %v899 = vmax.f32 %v829, 0.0
        %v900 = vmax.f32 %v834, 0.0
        %v901 = vmax.f32 %v837, 0.0
        %v902 = vmax.f32 %v842, 0.0
        %v903 = vmax.f32 %v845, 0.0
        %v904 = vmax.f32 %v850, 0.0
        %v905 = vmax.f32 %v853, 0.0
        %v906 = vmax.f32 %v858, 0.0
        %v907 = vmax.f32 %v861, 0.0
        %v908 = vmax.f32 %v866, 0.0
        %v909 = vmax.f32 %v869, 0.0
        %v910 = vmax.f32 %v874, 0.0
        %v911 = vmax.f32 %v877, 0.0
        %v912 = vld [vmem:[%s5] sm:$0xf]
        %v913 = vpack.c.bf16 %v881, %v880
        %v914 = vpack.c.bf16 %v883, %v882
        %v915 = vpack.c.bf16 %v885, %v884
        %v916 = vpack.c.bf16 %v887, %v886
        %v917 = vpack.c.bf16 %v889, %v888
        %v918 = vpack.c.bf16 %v891, %v890
        %v919 = vpack.c.bf16 %v893, %v892
        %v920 = vpack.c.bf16 %v895, %v894
        %v921 = vpack.c.bf16 %v897, %v896
        %v922 = vpack.c.bf16 %v899, %v898
        %v923 = vpack.c.bf16 %v901, %v900
        %v924 = vpack.c.bf16 %v903, %v902
        %v925 = vpack.c.bf16 %v905, %v904
        %v926 = vpack.c.bf16 %v907, %v906
        %v927 = vpack.c.bf16 %v909, %v908
        %v928 = vpack.c.bf16 %v911, %v910
        %v930 = vsel %vm373, %v912, 0
        %v933 = vsel %vm373, %v913, 0
        %v936 = vsel %vm373, %v914, 0
        %v939 = vsel %vm373, %v915, 0
        %v942 = vsel %vm373, %v916, 0
        %v945 = vsel %vm373, %v917, 0
        %v948 = vsel %vm373, %v918, 0
        %v951 = vsel %vm373, %v919, 0
        %v954 = vsel %vm373, %v920, 0
        %v957 = vsel %vm373, %v921, 0
        %v960 = vsel %vm373, %v922, 0
        %v963 = vsel %vm373, %v923, 0
        %v966 = vsel %vm373, %v924, 0
        %v969 = vsel %vm373, %v925, 0
        %v972 = vsel %vm373, %v926, 0
        %v975 = vsel %vm373, %v927, 0
        %v978 = vsel %vm373, %v928, 0
        %980 = vmatprep.subr.bf16.mxu0 0
        %981 = vmatpush1.bf16.xpose.msra.mxu0 %v933
        %982 = vmatprep.subr.bf16.mxu0 0
        %983 = vmatpush1.bf16.xpose.msra.mxu0 %v936
        %984 = vmatprep.subr.bf16.mxu0 0
        %985 = vmatpush1.bf16.xpose.msra.mxu0 %v939
        %986 = vmatprep.subr.bf16.mxu0 0
        %987 = vmatpush1.bf16.xpose.msra.mxu0 %v942
        %988 = vmatprep.subr.bf16.mxu0 0
        %989 = vmatpush1.bf16.xpose.msra.mxu0 %v945
        %990 = vmatprep.subr.bf16.mxu0 0
        %991 = vmatpush1.bf16.xpose.msra.mxu0 %v948
        %992 = vmatprep.subr.bf16.mxu0 0
        %993 = vmatpush1.bf16.xpose.msra.mxu0 %v951
        %994 = vmatprep.subr.bf16.mxu0 0
        %995 = vmatpush1.bf16.xpose.msra.mxu0 %v954
        %996 = vmatprep.subr.bf16.mxu0 0
        %997 = vmatpush1.bf16.xpose.msra.mxu0 %v957
        %998 = vmatprep.subr.bf16.mxu0 0
        %999 = vmatpush1.bf16.xpose.msra.mxu0 %v960
        %1000 = vmatprep.subr.bf16.mxu0 0
        %1001 = vmatpush1.bf16.xpose.msra.mxu0 %v963
        %1002 = vmatprep.subr.bf16.mxu0 0
        %1003 = vmatpush1.bf16.xpose.msra.mxu0 %v966
        %1004 = vmatprep.subr.bf16.mxu0 0
        %1005 = vmatpush1.bf16.xpose.msra.mxu0 %v969
        %1006 = vmatprep.subr.bf16.mxu0 0
        %1007 = vmatpush1.bf16.xpose.msra.mxu0 %v972
        %1008 = vmatprep.subr.bf16.mxu0 0
        %1009 = vmatpush1.bf16.xpose.msra.mxu0 %v975
        %1010 = vmatprep.subr.bf16.mxu0 0
        %1011 = vmatpush1.bf16.xpose.msra.mxu0 %v978
        %1012 = vmatprep.mubr.bf16.mxu0 0
        %1013 = vmatmul.mubr.bf16.gmra.mrb[0].mxu0 %v930
        %v1014 = vpop.f32.mrb[0].mxu0
        %v1015 = vadd.f32 0.0, %v1014
        %v1016 = vpop.f32.mrb[0].mxu0
        %v1017 = vadd.f32 0.0, %v1016
        %v1018 = vpop.f32.mrb[0].mxu0
        %v1019 = vpop.f32.mrb[0].mxu0
        %1020 = vdwg.mxu0
        %v1021 = vld [vmem:[#allocation2] sm:$0x1]
        %1023 = vset.pattern.permute.xlu0 0
        %1024 = vperm.xlu0 %1023, %v1021
        %v1025 = vpop.permute.xlu0 %1024
        %v1027 = vlaneseq
        %v1028 = vshrl.u32 %v1027, 7
        %v1029 = vsub.s32 0, %v1028
        %v1030 = vrot.slane %v1025, %v1029
        %v1031 = vadd.f32 %v1015, %v1030
        %v1032 = vadd.f32 %v1017, %v1030
        %v1033 = vxor.u32 %v1031, 2147483648
        %v1034 = vxor.u32 %v1032, 2147483648
        %v1035 = vmul.f32 %v1033, 1.442695
        %v1036 = vpow.pop %v1035
        %v1037 = vmul.f32 %v1034, 1.442695
        %v1038 = vpow.pop %v1037
        %v1039 = vadd.f32 %v1036, 1.0
        %v1040 = vadd.f32 %v1038, 1.0
        %v1041 = vrcp.pop %v1039
        %v1042 = vmul.f32 1.0, %v1041
        %v1043 = vrcp.pop %v1040
        %v1044 = vmul.f32 1.0, %v1043
        %v1047 = vcombine.low %v1042, %v1044
        %v1049 = vunpack.c.l.s4 1966171168
        %v1050 = vunpack.c.0.s8 %v1049
        %v1051 = vlaneseq
        %v1052 = vshrl.u32 %v1051, 7
        %v1053 = vsub.s32 %v1050, %v1052
        %v1054 = vrot.slane %v1047, %v1053
        %v1056 = vunpack.c.l.s4 1966171168
        %v1057 = vunpack.c.0.s8 %v1056
        %v1058 = vlaneseq
        %v1059 = vshrl.u32 %v1058, 7
        %v1060 = vsub.s32 %v1057, %v1059
        %v1061 = vrot.slane %v1054, %v1060
        %v1063 = vlaneseq
        %vm1064 = vcmp.ge.s32.totalorder %v1063, 0
        %vm1065 = vcmp.lt.s32.totalorder %v1063, 256
        %vm1066 = vmand %vm1064, %vm1065
        %1067 = vst.msk [vmem:[%s286] sm:$0x3] %vm1066, %v1061
        %s1068 = sand.u32 %s183, 1
        %s1069 = scalar_lea.sflag [#allocation4], %s1068
        %s1070 = sand.u32 %s183, 1
        %s1071 = smul.addr %s1070, 2
        %s1072 = scalar_lea.vmem [#allocation3], %s1071
        // Predicated region
        $region49: #{tpu_custom_call.1} parent=47 // pred_check
          %p1073 = pneg %p193
        $region50: #{tpu_custom_call.1} parent=47 // pred_check_branch
          %1075 = sbr.rel (%p1073) target = $region52
        $region51: #{tpu_custom_call.1} parent=47 // pred_region
          %s1077 = ssub.s32 32, 32
          %1078 = vsyncadd %s1069, %s1077
          %s1079 = smul.addr %s23, 2
          %s1080 = smul.addr %s1079, 16
          %s1081 = scalar_lea.hbm %s7, %s1080
          %s1083 = sshll.u32 %s1072, 4
          %s1084 = int_to_ptr.vmem [resolvable:$true] %s1083
          %1086 = dma.vmem_to_hbm [thread:$0]  %s1084, 32, %s1081, %s1069
        $region52: #{tpu_custom_call.1} parent=47 // pred_fallthru
          _
      $region48: #{tpu_custom_call.1} parent=5 // pred_fallthru
        _
      %p1087 = scmp.le.s32.totalorder 2, %s18
      // Predicated region
      $region53: #{tpu_custom_call.1} parent=5 // pred_check
        %p1088 = pneg %p1087
      $region54: #{tpu_custom_call.1} parent=5 // pred_check_branch
        %1090 = sbr.rel (%p1088) target = $region56
      $region55: #{tpu_custom_call.1} parent=5 // pred_region
        %s1091 = ssub.s32 %s18, 2
        // Predicated region
        $region57: #{tpu_custom_call.1} parent=55 // pred_check
          %p1092 = pneg %p199
        $region58: #{tpu_custom_call.1} parent=55 // pred_check_branch
          %1094 = sbr.rel (%p1092) target = $region60
        $region59: #{tpu_custom_call.1} parent=55 // pred_region
          %s1095 = sand.u32 %s184, 1
          %s1096 = scalar_lea.sflag [#allocation4], %s1095
          %s1097 = sand.u32 %s184, 1
          %s1098 = smul.addr %s1097, 2
          %s1099 = scalar_lea.vmem [#allocation3], %s1098
          %1100 = dma.done %s1096, 32
        $region60: #{tpu_custom_call.1} parent=55 // pred_fallthru
          _
      $region56: #{tpu_custom_call.1} parent=5 // pred_fallthru
        _
    $region6: #{tpu_custom_call.1} parent=1 // loop_footer
      %s22 = sadd.s32 1, %s18
    $region7: #{tpu_custom_call.1} parent=1 // loop_footer_branch
      %17 = sbr.rel target = $region3
    $region8: #{tpu_custom_call.1} parent=1 // loop_exit
      _
    %1101 = vsyncpa [#allocation4], 1
    %s1102 = scalar_lea.sflag [#allocation4], 1
    %1103 = vsyncpa %s1102, 1

</llo_original>
